<compile_context>
chip_gen: v7x
topology: tpu7x:2x2x1
jax: 0.10.0
libtpu: 0.0.40
codegen_flags: <defaults>
</compile_context>

<pallas_src>
import functools

import jax
import jax.numpy as jnp
from jax.experimental import pallas as pl
from jax.experimental.pallas import tpu as pltpu


def _round_up(x, m):
    return (x + m - 1) // m * m


# ----------------------------------------------------------------------------
# Fused kernel: conv1 + ReLU + conv2 + ReLU + flatten + fc1 + ReLU + fc2.
# One grid step == one tile of `bt` batch elements; all intermediates in VMEM.
# Row layout of every activation slab is (position, element-in-tile):
#   row = position * bt + element, so stride-2 conv2 taps become constant
#   8-aligned row shifts and fc1's per-position LHS is a contiguous bt-row block.
# ----------------------------------------------------------------------------
def _icm_inverse_kernel(x_ref, w1_ref, b1_ref, w2_ref, b2_ref, w3_ref, b3_ref,
                        w4_ref, b4_ref, out_ref, h_ref,
                        *, bt, r2, shifts, valid_rows):
    f32, bf16 = jnp.float32, jnp.bfloat16
    m2 = r2 * bt                      # conv2 GEMM rows

    # ---- Conv1: all 9 taps x 4 stride-phases in one block-diagonal GEMM.
    # Output lanes are packed as 4 phases x 32 channels (=128 lanes).
    acc1 = jnp.dot(x_ref[...], w1_ref[...], preferred_element_type=f32)
    h_ref[...] = jnp.maximum(acc1 + b1_ref[...], 0.0).astype(bf16)

    # ---- Conv2: 4 shift-group GEMMs, K = 128 (4 phases x 32 real channels).
    # Invalid taps of a group have zero weight rows, so the phase-packed junk
    # lanes (ReLU(b1) at padded conv1 positions) never reach a valid output.
    acc2 = jnp.zeros((m2, w2_ref.shape[-1]), f32)
    for g, s in enumerate(shifts):
        acc2 = acc2 + jnp.dot(h_ref[pl.ds(s * bt, m2), :], w2_ref[g],
                              preferred_element_type=f32)
    h2 = jnp.maximum(acc2 + b2_ref[...], 0.0).astype(bf16)

    # ---- Flatten + fc1: accumulate over the oh2*ow2 conv2 output positions;
    # each LHS is the contiguous bt-row block of that position (no gathers).
    y = jnp.zeros((bt, 128), f32)
    for idx, r in enumerate(valid_rows):
        y = y + jnp.dot(h2[r * bt:(r + 1) * bt, :], w3_ref[idx],
                        preferred_element_type=f32)
    y = jnp.maximum(y + b3_ref[...], 0.0).astype(bf16)

    # ---- fc2 (output lanes zero-padded to 128): lane-dense logits store.
    out_ref[...] = jnp.dot(y, w4_ref[...], preferred_element_type=f32) + b4_ref[...]


# ----------------------------------------------------------------------------
# Builder: bakes all static shape constants, returns (prepare_params, forward).
# ----------------------------------------------------------------------------
def build_inverse_model(*, n_actions, n_channels, height, width, block_batch=8):
    assert 1 <= n_actions <= 128
    assert block_batch % 8 == 0
    cin = 2 * n_channels
    co1, co2 = 32, 64                                   # fixed by the module
    oh1, ow1 = (height - 3) // 2 + 1, (width - 3) // 2 + 1
    oh2, ow2 = (oh1 - 3) // 2 + 1, (ow1 - 3) // 2 + 1
    assert oh1 >= 3 and ow1 >= 3 and oh2 >= 1 and ow2 >= 1
    gh1, gw1 = (oh1 + 1) // 2, (ow1 + 1) // 2           # conv1-out stride-2 phase grid
    r1 = gh1 * gw1                                      # packed rows / element (conv1)
    r2 = (oh2 - 1) * gw1 + ow2                          # rows / element holding conv2 out
    n_pos = oh2 * ow2
    k1 = 9 * cin
    bt = block_batch
    shifts = tuple(a * gw1 + b for (a, b) in ((0, 0), (0, 1), (1, 0), (1, 1)))
    valid_rows = tuple(i * gw1 + j for i in range(oh2) for j in range(ow2))
    # Invariants of the phase-packed / shifted-slab layout (hold for k=3, s=2
    # VALID convs; kept as guards so a layout change cannot silently corrupt).
    assert oh2 <= gh1 - 1 and ow2 <= gw1 - 1
    assert max(shifts) + r2 <= r1

    kernel = functools.partial(_icm_inverse_kernel, bt=bt, r2=r2,
                               shifts=shifts, valid_rows=valid_rows)

    # ---------------- one-time weight preparation (hoisted) ----------------
    def prepare_params(params):
        f32, bf16 = jnp.float32, jnp.bfloat16

        # conv1 (co1, cin, 3, 3) -> block-diagonal (4*k1, 4*co1=128), rows per
        # phase ordered (kh, kw, c); phase p maps to output lanes [32p, 32p+32).
        w1 = params["conv1_w"].astype(f32)
        w1g = jnp.transpose(w1, (2, 3, 1, 0)).reshape(k1, co1)
        w1k = jnp.zeros((4 * k1, 4 * co1), f32)
        for p in range(4):
            w1k = w1k.at[p * k1:(p + 1) * k1, p * co1:(p + 1) * co1].set(w1g)
        b1p = jnp.tile(params["conv1_b"].astype(f32), 4).reshape(1, 4 * co1)

        # conv2 (co2, co1, 3, 3) -> 4 shift groups of (128, co2); group (a, b)
        # holds tap (kh, kw) = (2a+ph, 2b+pw) in lane rows [32p, 32p+32).
        w2 = params["conv2_w"].astype(f32)
        w2g = jnp.zeros((4, 4 * co1, co2), f32)
        for gi, (a, b) in enumerate(((0, 0), (0, 1), (1, 0), (1, 1))):
            for ph in range(2):
                for pw in range(2):
                    kh, kw = 2 * a + ph, 2 * b + pw
                    if kh <= 2 and kw <= 2:
                        p = 2 * ph + pw
                        w2g = w2g.at[gi, p * co1:(p + 1) * co1, :].set(
                            w2[:, :, kh, kw].T)
        b2g = params["conv2_b"].astype(f32).reshape(1, co2)

        # fc1 (128, co2*n_pos), torch channel-major flatten -> (n_pos, co2, 128)
        w3 = params["fc1_w"].astype(f32).reshape(128, co2, n_pos)
        w3g = jnp.transpose(w3, (2, 1, 0))
        b3g = params["fc1_b"].astype(f32).reshape(1, 128)

        # fc2 (n_actions, 128) -> (128, 128) lane-padded
        w4g = jnp.pad(params["fc2_w"].astype(f32).T, ((0, 0), (0, 128 - n_actions)))
        b4g = jnp.pad(params["fc2_b"].astype(f32), (0, 128 - n_actions)).reshape(1, 128)

        return (w1k.astype(bf16), b1p, w2g.astype(bf16), b2g,
                w3g.astype(bf16), b3g, w4g.astype(bf16), b4g)

    # ------------------------------ forward --------------------------------
    def forward(prepared, state_latent, next_state_latent):
        w1k, b1p, w2g, b2g, w3g, b3g, w4g, b4g = prepared
        n = state_latent.shape[0]
        n_pad = _round_up(n, bt)
        t = n_pad // bt

        x = jnp.concatenate([state_latent, next_state_latent],
                            axis=1).astype(jnp.float32)
        if n_pad != n:
            x = jnp.pad(x, ((0, n_pad - n), (0, 0), (0, 0), (0, 0)))

        # conv1 im2col (stride 2, VALID), tap-major (kh, kw, c) patch layout.
        cols = []
        for kh in range(3):
            for kw in range(3):
                cols.append(x[:, :, kh:kh + 2 * oh1 - 1:2, kw:kw + 2 * ow1 - 1:2])
        q = jnp.stack(cols, axis=1)                               # (n,9,cin,oh1,ow1)
        q = jnp.transpose(q, (0, 3, 4, 1, 2)).reshape(n_pad, oh1, ow1, k1)
        # space-to-depth by 2: fold the 4 stride phases into the K (lane) dim.
        q = jnp.pad(q, ((0, 0), (0, 2 * gh1 - oh1), (0, 2 * gw1 - ow1), (0, 0)))
        q = q.reshape(n_pad, gh1, 2, gw1, 2, k1)
        q = jnp.transpose(q, (0, 1, 3, 2, 4, 5)).reshape(n_pad, r1, 4 * k1)
        # rows ordered (tile, position, element-in-tile) -> lane-dense 2D slab.
        q = q.reshape(t, bt, r1, 4 * k1)
        q = jnp.transpose(q, (0, 2, 1, 3)).reshape(t * r1 * bt, 4 * k1)
        xk = q.astype(jnp.bfloat16)

        out = pl.pallas_call(
            kernel,
            out_shape=jax.ShapeDtypeStruct((n_pad, 128), jnp.float32),
            grid=(t,),
            in_specs=[
                pl.BlockSpec((r1 * bt, 4 * k1), lambda i: (i, 0)),
                pl.BlockSpec((4 * k1, 4 * co1), lambda i: (0, 0)),
                pl.BlockSpec((1, 4 * co1), lambda i: (0, 0)),
                pl.BlockSpec((4, 4 * co1, co2), lambda i: (0, 0, 0)),
                pl.BlockSpec((1, co2), lambda i: (0, 0)),
                pl.BlockSpec((n_pos, co2, 128), lambda i: (0, 0, 0)),
                pl.BlockSpec((1, 128), lambda i: (0, 0)),
                pl.BlockSpec((128, 128), lambda i: (0, 0)),
                pl.BlockSpec((1, 128), lambda i: (0, 0)),
            ],
            out_specs=pl.BlockSpec((bt, 128), lambda i: (i, 0)),
            scratch_shapes=[pltpu.VMEM((r1 * bt, 4 * co1), jnp.bfloat16)],
            compiler_params=pltpu.CompilerParams(
                dimension_semantics=("parallel",)),
        )(xk, w1k, b1p, w2g, b2g, w3g, b3g, w4g, b4g)

        return out[:n, :n_actions]

    return prepare_params, forward


# ----------------------------------------------------------------------------
# Deterministic PyTorch-layout parameters + pure-JAX reference for validation.
# ----------------------------------------------------------------------------
def make_params(key, n_actions, n_channels, height, width):
    oh1, ow1 = (height - 3) // 2 + 1, (width - 3) // 2 + 1
    oh2, ow2 = (oh1 - 3) // 2 + 1, (ow1 - 3) // 2 + 1
    n_flatten = 64 * oh2 * ow2
    ks = jax.random.split(key, 8)
    f32 = jnp.float32
    return {
        "conv1_w": 0.1 * jax.random.normal(ks[0], (32, 2 * n_channels, 3, 3), f32),
        "conv1_b": 0.1 * jax.random.normal(ks[1], (32,), f32),
        "conv2_w": 0.1 * jax.random.normal(ks[2], (64, 32, 3, 3), f32),
        "conv2_b": 0.1 * jax.random.normal(ks[3], (64,), f32),
        "fc1_w":   0.1 * jax.random.normal(ks[4], (128, n_flatten), f32),
        "fc1_b":   0.1 * jax.random.normal(ks[5], (128,), f32),
        "fc2_w":   0.1 * jax.random.normal(ks[6], (n_actions, 128), f32),
        "fc2_b":   0.1 * jax.random.normal(ks[7], (n_actions,), f32),
    }


def reference_forward(params, state_latent, next_state_latent):
    x = jnp.concatenate([state_latent, next_state_latent], axis=1)

    def conv(v, w, b, stride):
        y = jax.lax.conv_general_dilated(
            v, w, window_strides=(stride, stride), padding="VALID",
            dimension_numbers=("NCHW", "OIHW", "NCHW"))
        return y + b[None, :, None, None]

    h = jax.nn.relu(conv(x, params["conv1_w"], params["conv1_b"], 2))
    h = jax.nn.relu(conv(h, params["conv2_w"], params["conv2_b"], 2))
    h = h.reshape(h.shape[0], -1)                    # torch Flatten (c-major)
    h = jax.nn.relu(h @ params["fc1_w"].T + params["fc1_b"])
    return h @ params["fc2_w"].T + params["fc2_b"]


if __name__ == "__main__":
    N, C, H, W = 2, 4, 16, 16          # state_converter.shape = (C, H, W)
    n_actions = 6                      # discrete action space

    key = jax.random.PRNGKey(0)
    k_param, k_s, k_ns = jax.random.split(key, 3)
    params = make_params(k_param, n_actions, C, H, W)

    prepare_params, forward = build_inverse_model(
        n_actions=n_actions, n_channels=C, height=H, width=W, block_batch=8)
    prepared = prepare_params(params)

    state_latent = jax.random.normal(k_s, (N, C, H, W), jnp.float32)
    next_state_latent = jax.random.normal(k_ns, (N, C, H, W), jnp.float32)

    fwd = jax.jit(forward)
    logits = fwd(prepared, state_latent, next_state_latent)
    jax.block_until_ready(logits)

    assert logits.shape == (N, n_actions), logits.shape
    assert logits.dtype == jnp.float32

    ref = reference_forward(params, state_latent, next_state_latent)
    max_err = float(jnp.max(jnp.abs(logits - ref)))
    # bf16 matmul inputs with f32 accumulation: tolerance loosened vs pure-f32.
    assert jnp.allclose(logits, ref, rtol=5e-2, atol=5e-2), max_err

    print("KERNEL_OK")
</pallas_src>

<mosaic_0001>
module attributes {stable_mosaic.version = 11 : i64} {
  func.func @_icm_inverse_kernel(%arg0: i32, %arg1: memref<128x288xbf16, #tpu.memory_space<vmem>>, %arg2: memref<288x128xbf16, #tpu.memory_space<vmem>>, %arg3: memref<1x128xf32, #tpu.memory_space<vmem>>, %arg4: memref<4x128x64xbf16, #tpu.memory_space<vmem>>, %arg5: memref<1x64xf32, #tpu.memory_space<vmem>>, %arg6: memref<9x64x128xbf16, #tpu.memory_space<vmem>>, %arg7: memref<1x128xf32, #tpu.memory_space<vmem>>, %arg8: memref<128x128xbf16, #tpu.memory_space<vmem>>, %arg9: memref<1x128xf32, #tpu.memory_space<vmem>>, %arg10: memref<8x128xf32, #tpu.memory_space<vmem>>, %arg11: memref<128x128xbf16, #tpu.memory_space<vmem>>) attributes {dimension_semantics = [#tpu.dimension_semantics<parallel>], iteration_bounds = array<i64: 1>, scalar_prefetch = 0 : i64, scratch_operands = 1 : i64, tpu.core_type = #tpu.core_type<tc>, window_params = [{transform_indices = @transform_0, window_bounds = array<i64: 128, 288>}, {pipeline_mode = #tpu.pipeline_mode<synchronous>, transform_indices = @transform_1, window_bounds = array<i64: 288, 128>}, {pipeline_mode = #tpu.pipeline_mode<synchronous>, transform_indices = @transform_2, window_bounds = array<i64: 1, 128>}, {pipeline_mode = #tpu.pipeline_mode<synchronous>, transform_indices = @transform_3, window_bounds = array<i64: 4, 128, 64>}, {pipeline_mode = #tpu.pipeline_mode<synchronous>, transform_indices = @transform_4, window_bounds = array<i64: 1, 64>}, {pipeline_mode = #tpu.pipeline_mode<synchronous>, transform_indices = @transform_5, window_bounds = array<i64: 9, 64, 128>}, {pipeline_mode = #tpu.pipeline_mode<synchronous>, transform_indices = @transform_6, window_bounds = array<i64: 1, 128>}, {pipeline_mode = #tpu.pipeline_mode<synchronous>, transform_indices = @transform_7, window_bounds = array<i64: 128, 128>}, {pipeline_mode = #tpu.pipeline_mode<synchronous>, transform_indices = @transform_8, window_bounds = array<i64: 1, 128>}, {transform_indices = @transform_9, window_bounds = array<i64: 8, 128>}]} {
    %c0 = arith.constant 0 : index
    %c0_0 = arith.constant 0 : index
    %0 = vector.load %arg1[%c0, %c0_0] : memref<128x288xbf16, #tpu.memory_space<vmem>>, vector<128x288xbf16>
    %c0_1 = arith.constant 0 : index
    %c0_2 = arith.constant 0 : index
    %1 = vector.load %arg2[%c0_1, %c0_2] : memref<288x128xbf16, #tpu.memory_space<vmem>>, vector<288x128xbf16>
    %cst = arith.constant dense<0.000000e+00> : vector<128x128xf32>
    %2 = tpu.matmul %0, %1, %cst {dimension_numbers = #tpu.dot_dimension_numbers<[1], [0], [0], [1], [0, 0, 1, 1], [], []>} : vector<128x288xbf16>, vector<288x128xbf16>, vector<128x128xf32> -> vector<128x128xf32>
    %c0_3 = arith.constant 0 : index
    %c0_4 = arith.constant 0 : index
    %3 = vector.load %arg3[%c0_3, %c0_4] : memref<1x128xf32, #tpu.memory_space<vmem>>, vector<1x128xf32>
    %4 = vector.broadcast %3 : vector<1x128xf32> to vector<128x128xf32>
    %5 = arith.addf %2, %4 : vector<128x128xf32>
    %cst_5 = arith.constant 0.000000e+00 : f32
    %6 = vector.broadcast %cst_5 : f32 to vector<128x128xf32>
    %7 = arith.maximumf %5, %6 : vector<128x128xf32>
    %8 = arith.truncf %7 : vector<128x128xf32> to vector<128x128xbf16>
    %c0_6 = arith.constant 0 : index
    %c0_7 = arith.constant 0 : index
    %9 = vector.load %arg11[%c0_6, %c0_7] : memref<128x128xbf16, #tpu.memory_space<vmem>>, vector<128x128xbf16>
    tpu.vector_store %arg11[%c0_6, %c0_7], %8 {strides = array<i32>} : memref<128x128xbf16, #tpu.memory_space<vmem>>, vector<128x128xbf16>,
    %cst_8 = arith.constant 0.000000e+00 : f32
    %10 = vector.broadcast %cst_8 : f32 to vector<88x64xf32>
    %c0_9 = arith.constant 0 : index
    %c0_10 = arith.constant 0 : index
    %11 = vector.load %arg11[%c0_9, %c0_10] : memref<128x128xbf16, #tpu.memory_space<vmem>>, vector<88x128xbf16>
    %c0_11 = arith.constant 0 : index
    %c0_12 = arith.constant 0 : index
    %c0_13 = arith.constant 0 : index
    %12 = vector.load %arg4[%c0_11, %c0_12, %c0_13] : memref<4x128x64xbf16, #tpu.memory_space<vmem>>, vector<1x128x64xbf16>
    %13 = vector.shape_cast %12 : vector<1x128x64xbf16> to vector<128x64xbf16>
    %cst_14 = arith.constant dense<0.000000e+00> : vector<88x64xf32>
    %14 = tpu.matmul %11, %13, %cst_14 {dimension_numbers = #tpu.dot_dimension_numbers<[1], [0], [0], [1], [0, 0, 1, 1], [], []>} : vector<88x128xbf16>, vector<128x64xbf16>, vector<88x64xf32> -> vector<88x64xf32>
    %15 = arith.addf %10, %14 : vector<88x64xf32>
    %c8 = arith.constant 8 : index
    %c0_15 = arith.constant 0 : index
    %16 = vector.load %arg11[%c8, %c0_15] : memref<128x128xbf16, #tpu.memory_space<vmem>>, vector<88x128xbf16>
    %c1 = arith.constant 1 : index
    %c0_16 = arith.constant 0 : index
    %c0_17 = arith.constant 0 : index
    %17 = vector.load %arg4[%c1, %c0_16, %c0_17] : memref<4x128x64xbf16, #tpu.memory_space<vmem>>, vector<1x128x64xbf16>
    %18 = vector.shape_cast %17 : vector<1x128x64xbf16> to vector<128x64xbf16>
    %cst_18 = arith.constant dense<0.000000e+00> : vector<88x64xf32>
    %19 = tpu.matmul %16, %18, %cst_18 {dimension_numbers = #tpu.dot_dimension_numbers<[1], [0], [0], [1], [0, 0, 1, 1], [], []>} : vector<88x128xbf16>, vector<128x64xbf16>, vector<88x64xf32> -> vector<88x64xf32>
    %20 = arith.addf %15, %19 : vector<88x64xf32>
    %c32 = arith.constant 32 : index
    %c0_19 = arith.constant 0 : index
    %21 = vector.load %arg11[%c32, %c0_19] : memref<128x128xbf16, #tpu.memory_space<vmem>>, vector<88x128xbf16>
    %c2 = arith.constant 2 : index
    %c0_20 = arith.constant 0 : index
    %c0_21 = arith.constant 0 : index
    %22 = vector.load %arg4[%c2, %c0_20, %c0_21] : memref<4x128x64xbf16, #tpu.memory_space<vmem>>, vector<1x128x64xbf16>
    %23 = vector.shape_cast %22 : vector<1x128x64xbf16> to vector<128x64xbf16>
    %cst_22 = arith.constant dense<0.000000e+00> : vector<88x64xf32>
    %24 = tpu.matmul %21, %23, %cst_22 {dimension_numbers = #tpu.dot_dimension_numbers<[1], [0], [0], [1], [0, 0, 1, 1], [], []>} : vector<88x128xbf16>, vector<128x64xbf16>, vector<88x64xf32> -> vector<88x64xf32>
    %25 = arith.addf %20, %24 : vector<88x64xf32>
    %c40 = arith.constant 40 : index
    %c0_23 = arith.constant 0 : index
    %26 = vector.load %arg11[%c40, %c0_23] : memref<128x128xbf16, #tpu.memory_space<vmem>>, vector<88x128xbf16>
    %c3 = arith.constant 3 : index
    %c0_24 = arith.constant 0 : index
    %c0_25 = arith.constant 0 : index
    %27 = vector.load %arg4[%c3, %c0_24, %c0_25] : memref<4x128x64xbf16, #tpu.memory_space<vmem>>, vector<1x128x64xbf16>
    %28 = vector.shape_cast %27 : vector<1x128x64xbf16> to vector<128x64xbf16>
    %cst_26 = arith.constant dense<0.000000e+00> : vector<88x64xf32>
    %29 = tpu.matmul %26, %28, %cst_26 {dimension_numbers = #tpu.dot_dimension_numbers<[1], [0], [0], [1], [0, 0, 1, 1], [], []>} : vector<88x128xbf16>, vector<128x64xbf16>, vector<88x64xf32> -> vector<88x64xf32>
    %30 = arith.addf %25, %29 : vector<88x64xf32>
    %c0_27 = arith.constant 0 : index
    %c0_28 = arith.constant 0 : index
    %31 = vector.load %arg5[%c0_27, %c0_28] : memref<1x64xf32, #tpu.memory_space<vmem>>, vector<1x64xf32>
    %32 = vector.broadcast %31 : vector<1x64xf32> to vector<88x64xf32>
    %33 = arith.addf %30, %32 : vector<88x64xf32>
    %cst_29 = arith.constant 0.000000e+00 : f32
    %34 = vector.broadcast %cst_29 : f32 to vector<88x64xf32>
    %35 = arith.maximumf %33, %34 : vector<88x64xf32>
    %36 = arith.truncf %35 : vector<88x64xf32> to vector<88x64xbf16>
    %cst_30 = arith.constant 0.000000e+00 : f32
    %37 = vector.broadcast %cst_30 : f32 to vector<8x128xf32>
    %38 = vector.extract_strided_slice %36 {offsets = [0, 0], sizes = [8, 64], strides = [1, 1]} : vector<88x64xbf16> to vector<8x64xbf16>
    %c0_31 = arith.constant 0 : index
    %c0_32 = arith.constant 0 : index
    %c0_33 = arith.constant 0 : index
    %39 = vector.load %arg6[%c0_31, %c0_32, %c0_33] : memref<9x64x128xbf16, #tpu.memory_space<vmem>>, vector<1x64x128xbf16>
    %40 = vector.shape_cast %39 : vector<1x64x128xbf16> to vector<64x128xbf16>
    %cst_34 = arith.constant dense<0.000000e+00> : vector<8x128xf32>
    %41 = tpu.matmul %38, %40, %cst_34 {dimension_numbers = #tpu.dot_dimension_numbers<[1], [0], [0], [1], [0, 0, 1, 1], [], []>} : vector<8x64xbf16>, vector<64x128xbf16>, vector<8x128xf32> -> vector<8x128xf32>
    %42 = arith.addf %37, %41 : vector<8x128xf32>
    %43 = vector.extract_strided_slice %36 {offsets = [8, 0], sizes = [8, 64], strides = [1, 1]} : vector<88x64xbf16> to vector<8x64xbf16>
    %c1_35 = arith.constant 1 : index
    %c0_36 = arith.constant 0 : index
    %c0_37 = arith.constant 0 : index
    %44 = vector.load %arg6[%c1_35, %c0_36, %c0_37] : memref<9x64x128xbf16, #tpu.memory_space<vmem>>, vector<1x64x128xbf16>
    %45 = vector.shape_cast %44 : vector<1x64x128xbf16> to vector<64x128xbf16>
    %cst_38 = arith.constant dense<0.000000e+00> : vector<8x128xf32>
    %46 = tpu.matmul %43, %45, %cst_38 {dimension_numbers = #tpu.dot_dimension_numbers<[1], [0], [0], [1], [0, 0, 1, 1], [], []>} : vector<8x64xbf16>, vector<64x128xbf16>, vector<8x128xf32> -> vector<8x128xf32>
    %47 = arith.addf %42, %46 : vector<8x128xf32>
    %48 = vector.extract_strided_slice %36 {offsets = [16, 0], sizes = [8, 64], strides = [1, 1]} : vector<88x64xbf16> to vector<8x64xbf16>
    %c2_39 = arith.constant 2 : index
    %c0_40 = arith.constant 0 : index
    %c0_41 = arith.constant 0 : index
    %49 = vector.load %arg6[%c2_39, %c0_40, %c0_41] : memref<9x64x128xbf16, #tpu.memory_space<vmem>>, vector<1x64x128xbf16>
    %50 = vector.shape_cast %49 : vector<1x64x128xbf16> to vector<64x128xbf16>
    %cst_42 = arith.constant dense<0.000000e+00> : vector<8x128xf32>
    %51 = tpu.matmul %48, %50, %cst_42 {dimension_numbers = #tpu.dot_dimension_numbers<[1], [0], [0], [1], [0, 0, 1, 1], [], []>} : vector<8x64xbf16>, vector<64x128xbf16>, vector<8x128xf32> -> vector<8x128xf32>
    %52 = arith.addf %47, %51 : vector<8x128xf32>
    %53 = vector.extract_strided_slice %36 {offsets = [32, 0], sizes = [8, 64], strides = [1, 1]} : vector<88x64xbf16> to vector<8x64xbf16>
    %c3_43 = arith.constant 3 : index
    %c0_44 = arith.constant 0 : index
    %c0_45 = arith.constant 0 : index
    %54 = vector.load %arg6[%c3_43, %c0_44, %c0_45] : memref<9x64x128xbf16, #tpu.memory_space<vmem>>, vector<1x64x128xbf16>
    %55 = vector.shape_cast %54 : vector<1x64x128xbf16> to vector<64x128xbf16>
    %cst_46 = arith.constant dense<0.000000e+00> : vector<8x128xf32>
    %56 = tpu.matmul %53, %55, %cst_46 {dimension_numbers = #tpu.dot_dimension_numbers<[1], [0], [0], [1], [0, 0, 1, 1], [], []>} : vector<8x64xbf16>, vector<64x128xbf16>, vector<8x128xf32> -> vector<8x128xf32>
    %57 = arith.addf %52, %56 : vector<8x128xf32>
    %58 = vector.extract_strided_slice %36 {offsets = [40, 0], sizes = [8, 64], strides = [1, 1]} : vector<88x64xbf16> to vector<8x64xbf16>
    %c4 = arith.constant 4 : index
    %c0_47 = arith.constant 0 : index
    %c0_48 = arith.constant 0 : index
    %59 = vector.load %arg6[%c4, %c0_47, %c0_48] : memref<9x64x128xbf16, #tpu.memory_space<vmem>>, vector<1x64x128xbf16>
    %60 = vector.shape_cast %59 : vector<1x64x128xbf16> to vector<64x128xbf16>
    %cst_49 = arith.constant dense<0.000000e+00> : vector<8x128xf32>
    %61 = tpu.matmul %58, %60, %cst_49 {dimension_numbers = #tpu.dot_dimension_numbers<[1], [0], [0], [1], [0, 0, 1, 1], [], []>} : vector<8x64xbf16>, vector<64x128xbf16>, vector<8x128xf32> -> vector<8x128xf32>
    %62 = arith.addf %57, %61 : vector<8x128xf32>
    %63 = vector.extract_strided_slice %36 {offsets = [48, 0], sizes = [8, 64], strides = [1, 1]} : vector<88x64xbf16> to vector<8x64xbf16>
    %c5 = arith.constant 5 : index
    %c0_50 = arith.constant 0 : index
    %c0_51 = arith.constant 0 : index
    %64 = vector.load %arg6[%c5, %c0_50, %c0_51] : memref<9x64x128xbf16, #tpu.memory_space<vmem>>, vector<1x64x128xbf16>
    %65 = vector.shape_cast %64 : vector<1x64x128xbf16> to vector<64x128xbf16>
    %cst_52 = arith.constant dense<0.000000e+00> : vector<8x128xf32>
    %66 = tpu.matmul %63, %65, %cst_52 {dimension_numbers = #tpu.dot_dimension_numbers<[1], [0], [0], [1], [0, 0, 1, 1], [], []>} : vector<8x64xbf16>, vector<64x128xbf16>, vector<8x128xf32> -> vector<8x128xf32>
    %67 = arith.addf %62, %66 : vector<8x128xf32>
    %68 = vector.extract_strided_slice %36 {offsets = [64, 0], sizes = [8, 64], strides = [1, 1]} : vector<88x64xbf16> to vector<8x64xbf16>
    %c6 = arith.constant 6 : index
    %c0_53 = arith.constant 0 : index
    %c0_54 = arith.constant 0 : index
    %69 = vector.load %arg6[%c6, %c0_53, %c0_54] : memref<9x64x128xbf16, #tpu.memory_space<vmem>>, vector<1x64x128xbf16>
    %70 = vector.shape_cast %69 : vector<1x64x128xbf16> to vector<64x128xbf16>
    %cst_55 = arith.constant dense<0.000000e+00> : vector<8x128xf32>
    %71 = tpu.matmul %68, %70, %cst_55 {dimension_numbers = #tpu.dot_dimension_numbers<[1], [0], [0], [1], [0, 0, 1, 1], [], []>} : vector<8x64xbf16>, vector<64x128xbf16>, vector<8x128xf32> -> vector<8x128xf32>
    %72 = arith.addf %67, %71 : vector<8x128xf32>
    %73 = vector.extract_strided_slice %36 {offsets = [72, 0], sizes = [8, 64], strides = [1, 1]} : vector<88x64xbf16> to vector<8x64xbf16>
    %c7 = arith.constant 7 : index
    %c0_56 = arith.constant 0 : index
    %c0_57 = arith.constant 0 : index
    %74 = vector.load %arg6[%c7, %c0_56, %c0_57] : memref<9x64x128xbf16, #tpu.memory_space<vmem>>, vector<1x64x128xbf16>
    %75 = vector.shape_cast %74 : vector<1x64x128xbf16> to vector<64x128xbf16>
    %cst_58 = arith.constant dense<0.000000e+00> : vector<8x128xf32>
    %76 = tpu.matmul %73, %75, %cst_58 {dimension_numbers = #tpu.dot_dimension_numbers<[1], [0], [0], [1], [0, 0, 1, 1], [], []>} : vector<8x64xbf16>, vector<64x128xbf16>, vector<8x128xf32> -> vector<8x128xf32>
    %77 = arith.addf %72, %76 : vector<8x128xf32>
    %78 = vector.extract_strided_slice %36 {offsets = [80, 0], sizes = [8, 64], strides = [1, 1]} : vector<88x64xbf16> to vector<8x64xbf16>
    %c8_59 = arith.constant 8 : index
    %c0_60 = arith.constant 0 : index
    %c0_61 = arith.constant 0 : index
    %79 = vector.load %arg6[%c8_59, %c0_60, %c0_61] : memref<9x64x128xbf16, #tpu.memory_space<vmem>>, vector<1x64x128xbf16>
    %80 = vector.shape_cast %79 : vector<1x64x128xbf16> to vector<64x128xbf16>
    %cst_62 = arith.constant dense<0.000000e+00> : vector<8x128xf32>
    %81 = tpu.matmul %78, %80, %cst_62 {dimension_numbers = #tpu.dot_dimension_numbers<[1], [0], [0], [1], [0, 0, 1, 1], [], []>} : vector<8x64xbf16>, vector<64x128xbf16>, vector<8x128xf32> -> vector<8x128xf32>
    %82 = arith.addf %77, %81 : vector<8x128xf32>
    %c0_63 = arith.constant 0 : index
    %c0_64 = arith.constant 0 : index
    %83 = vector.load %arg7[%c0_63, %c0_64] : memref<1x128xf32, #tpu.memory_space<vmem>>, vector<1x128xf32>
    %84 = vector.broadcast %83 : vector<1x128xf32> to vector<8x128xf32>
    %85 = arith.addf %82, %84 : vector<8x128xf32>
    %cst_65 = arith.constant 0.000000e+00 : f32
    %86 = vector.broadcast %cst_65 : f32 to vector<8x128xf32>
    %87 = arith.maximumf %85, %86 : vector<8x128xf32>
    %88 = arith.truncf %87 : vector<8x128xf32> to vector<8x128xbf16>
    %c0_66 = arith.constant 0 : index
    %c0_67 = arith.constant 0 : index
    %89 = vector.load %arg8[%c0_66, %c0_67] : memref<128x128xbf16, #tpu.memory_space<vmem>>, vector<128x128xbf16>
    %cst_68 = arith.constant dense<0.000000e+00> : vector<8x128xf32>
    %90 = tpu.matmul %88, %89, %cst_68 {dimension_numbers = #tpu.dot_dimension_numbers<[1], [0], [0], [1], [0, 0, 1, 1], [], []>} : vector<8x128xbf16>, vector<128x128xbf16>, vector<8x128xf32> -> vector<8x128xf32>
    %c0_69 = arith.constant 0 : index
    %c0_70 = arith.constant 0 : index
    %91 = vector.load %arg9[%c0_69, %c0_70] : memref<1x128xf32, #tpu.memory_space<vmem>>, vector<1x128xf32>
    %92 = vector.broadcast %91 : vector<1x128xf32> to vector<8x128xf32>
    %93 = arith.addf %90, %92 : vector<8x128xf32>
    %c0_71 = arith.constant 0 : index
    %c0_72 = arith.constant 0 : index
    %94 = vector.load %arg10[%c0_71, %c0_72] : memref<8x128xf32, #tpu.memory_space<vmem>>, vector<8x128xf32>
    tpu.vector_store %arg10[%c0_71, %c0_72], %93 {strides = array<i32>} : memref<8x128xf32, #tpu.memory_space<vmem>>, vector<8x128xf32>,
    return
  }
  func.func @transform_0(%arg0: i32) -> (i32, i32) {
    %c0_i32 = arith.constant 0 : i32
    %c0_i32_0 = arith.constant 0 : i32
    return %arg0, %c0_i32 : i32, i32
  }
  func.func @transform_1(%arg0: i32) -> (i32, i32) {
    %c0_i32 = arith.constant 0 : i32
    %c0_i32_0 = arith.constant 0 : i32
    %c0_i32_1 = arith.constant 0 : i32
    return %c0_i32, %c0_i32_0 : i32, i32
  }
  func.func @transform_2(%arg0: i32) -> (i32, i32) {
    %c0_i32 = arith.constant 0 : i32
    %c0_i32_0 = arith.constant 0 : i32
    %c0_i32_1 = arith.constant 0 : i32
    return %c0_i32, %c0_i32_0 : i32, i32
  }
  func.func @transform_3(%arg0: i32) -> (i32, i32, i32) {
    %c0_i32 = arith.constant 0 : i32
    %c0_i32_0 = arith.constant 0 : i32
    %c0_i32_1 = arith.constant 0 : i32
    %c0_i32_2 = arith.constant 0 : i32
    return %c0_i32, %c0_i32_0, %c0_i32_1 : i32, i32, i32
  }
  func.func @transform_4(%arg0: i32) -> (i32, i32) {
    %c0_i32 = arith.constant 0 : i32
    %c0_i32_0 = arith.constant 0 : i32
    %c0_i32_1 = arith.constant 0 : i32
    return %c0_i32, %c0_i32_0 : i32, i32
  }
  func.func @transform_5(%arg0: i32) -> (i32, i32, i32) {
    %c0_i32 = arith.constant 0 : i32
    %c0_i32_0 = arith.constant 0 : i32
    %c0_i32_1 = arith.constant 0 : i32
    %c0_i32_2 = arith.constant 0 : i32
    return %c0_i32, %c0_i32_0, %c0_i32_1 : i32, i32, i32
  }
  func.func @transform_6(%arg0: i32) -> (i32, i32) {
    %c0_i32 = arith.constant 0 : i32
    %c0_i32_0 = arith.constant 0 : i32
    %c0_i32_1 = arith.constant 0 : i32
    return %c0_i32, %c0_i32_0 : i32, i32
  }
  func.func @transform_7(%arg0: i32) -> (i32, i32) {
    %c0_i32 = arith.constant 0 : i32
    %c0_i32_0 = arith.constant 0 : i32
    %c0_i32_1 = arith.constant 0 : i32
    return %c0_i32, %c0_i32_0 : i32, i32
  }
  func.func @transform_8(%arg0: i32) -> (i32, i32) {
    %c0_i32 = arith.constant 0 : i32
    %c0_i32_0 = arith.constant 0 : i32
    %c0_i32_1 = arith.constant 0 : i32
    return %c0_i32, %c0_i32_0 : i32, i32
  }
  func.func @transform_9(%arg0: i32) -> (i32, i32) {
    %c0_i32 = arith.constant 0 : i32
    %c0_i32_0 = arith.constant 0 : i32
    return %arg0, %c0_i32 : i32, i32
  }
}

</mosaic_0001>

<llo_original>
// kernel: forward.1
$region0: #{forward.1}
  #allocation0 [shape = 'u32[]', space=smem, size = 0x4, offset = 0x4, fixed_abs, tag = 'smem constant byte address 0x4 - core index']
  #allocation1 [shape = 'u32[144,128]{1,0:T(1,128)}', space=vmem, size = 0x12000, scoped, tag = 'internal scratch']
  #allocation2 [shape = 'bf16[128,128]{1,0:T(16,128)(2,1)}', space=vmem, size = 0x8000, scoped, tag = 'scratch operand']
  %s0 = inlined_call_operand.vmem [shape: bf16[128,288], index: 0, kind: input, shape index: {}]
  %s1 = inlined_call_operand.vmem [shape: bf16[288,128], index: 1, kind: input, shape index: {}]
  %s2 = inlined_call_operand.vmem [shape: f32[1,128], index: 2, kind: input, shape index: {}]
  %s3 = inlined_call_operand.vmem [shape: bf16[4,128,64], index: 3, kind: input, shape index: {}]
  %s4 = inlined_call_operand.vmem [shape: f32[1,64], index: 4, kind: input, shape index: {}]
  %s5 = inlined_call_operand.vmem [shape: bf16[9,64,128], index: 5, kind: input, shape index: {}]
  %s6 = inlined_call_operand.vmem [shape: f32[1,128], index: 6, kind: input, shape index: {}]
  %s7 = inlined_call_operand.vmem [shape: bf16[128,128], index: 7, kind: input, shape index: {}]
  %s8 = inlined_call_operand.vmem [shape: f32[1,128], index: 8, kind: input, shape index: {}]
  %s9 = inlined_call_operand.vmem [shape: f32[8,128], index: 9, kind: output, shape index: {}]
  %s10 = sld [smem:[#allocation0]]
  $region46: #{forward.1} parent=0
    _
  %s12 = ssub.s32 1, %s10
  %s13 = scalar_select 0, %s12, %s10
  // Predicated region
  $region2: #{forward.1} parent=0 // pred_check
    _
  $region3: #{forward.1} parent=0 // pred_check_branch
    %15 = sbr.rel (0) target = $region5
  $region4: #{forward.1} parent=0 // pred_region
    _
  $region5: #{forward.1} parent=0 // pred_fallthru
    _
  // Predicated region
  $region6: #{forward.1} parent=0 // pred_check
    _
  $region7: #{forward.1} parent=0 // pred_check_branch
    %17 = sbr.rel (0) target = $region9
  $region8: #{forward.1} parent=0 // pred_region
    _
  $region9: #{forward.1} parent=0 // pred_fallthru
    _
  // Predicated region
  $region10: #{forward.1} parent=0 // pred_check
    _
  $region11: #{forward.1} parent=0 // pred_check_branch
    %19 = sbr.rel (0) target = $region13
  $region12: #{forward.1} parent=0 // pred_region
    _
  $region13: #{forward.1} parent=0 // pred_fallthru
    _
  // Predicated region
  $region14: #{forward.1} parent=0 // pred_check
    _
  $region15: #{forward.1} parent=0 // pred_check_branch
    %21 = sbr.rel (0) target = $region17
  $region16: #{forward.1} parent=0 // pred_region
    _
  $region17: #{forward.1} parent=0 // pred_fallthru
    _
  // Predicated region
  $region18: #{forward.1} parent=0 // pred_check
    _
  $region19: #{forward.1} parent=0 // pred_check_branch
    %23 = sbr.rel (0) target = $region21
  $region20: #{forward.1} parent=0 // pred_region
    _
  $region21: #{forward.1} parent=0 // pred_fallthru
    _
  // Predicated region
  $region22: #{forward.1} parent=0 // pred_check
    _
  $region23: #{forward.1} parent=0 // pred_check_branch
    %25 = sbr.rel (0) target = $region25
  $region24: #{forward.1} parent=0 // pred_region
    _
  $region25: #{forward.1} parent=0 // pred_fallthru
    _
  // Predicated region
  $region26: #{forward.1} parent=0 // pred_check
    _
  $region27: #{forward.1} parent=0 // pred_check_branch
    %27 = sbr.rel (0) target = $region29
  $region28: #{forward.1} parent=0 // pred_region
    _
  $region29: #{forward.1} parent=0 // pred_fallthru
    _
  // Predicated region
  $region30: #{forward.1} parent=0 // pred_check
    _
  $region31: #{forward.1} parent=0 // pred_check_branch
    %29 = sbr.rel (0) target = $region33
  $region32: #{forward.1} parent=0 // pred_region
    _
  $region33: #{forward.1} parent=0 // pred_fallthru
    _
  // Predicated region
  $region34: #{forward.1} parent=0 // pred_check
    _
  $region35: #{forward.1} parent=0 // pred_check_branch
    %31 = sbr.rel (0) target = $region37
  $region36: #{forward.1} parent=0 // pred_region
    _
  $region37: #{forward.1} parent=0 // pred_fallthru
    _
  %v33 = vld [vmem:[%s0] sm:$0xff]
  %v34 = vld [vmem:[%s0 + $0x8] sm:$0xf]
  %v35 = vld [vmem:[%s0 + $0xc] sm:$0xff]
  %v36 = vld [vmem:[%s0 + $0x14] sm:$0xf]
  %v37 = vld [vmem:[%s0 + $0x18] sm:$0xff]
  %v38 = vld [vmem:[%s0 + $0x20] sm:$0xf]
  %v39 = vld [vmem:[%s0 + $0x24] sm:$0xff]
  %v40 = vld [vmem:[%s0 + $0x2c] sm:$0xf]
  %v41 = vld [vmem:[%s0 + $0x30] sm:$0xff]
  %v42 = vld [vmem:[%s0 + $0x38] sm:$0xf]
  %v43 = vld [vmem:[%s0 + $0x3c] sm:$0xff]
  %v44 = vld [vmem:[%s0 + $0x44] sm:$0xf]
  %v45 = vld [vmem:[%s0 + $0x48] sm:$0xff]
  %v46 = vld [vmem:[%s0 + $0x50] sm:$0xf]
  %v47 = vld [vmem:[%s0 + $0x54] sm:$0xff]
  %v48 = vld [vmem:[%s0 + $0x5c] sm:$0xf]
  %v49 = vld [vmem:[%s0 + $0x60] sm:$0xff]
  %v50 = vld [vmem:[%s0 + $0x68] sm:$0xf]
  %v51 = vld [vmem:[%s0 + $0x6c] sm:$0xff]
  %v52 = vld [vmem:[%s0 + $0x74] sm:$0xf]
  %v53 = vld [vmem:[%s0 + $0x78] sm:$0xff]
  %v54 = vld [vmem:[%s0 + $0x80] sm:$0xf]
  %v55 = vld [vmem:[%s0 + $0x84] sm:$0xff]
  %v56 = vld [vmem:[%s0 + $0x8c] sm:$0xf]
  %v57 = vld [vmem:[%s0 + $0x90] sm:$0xff]
  %v58 = vld [vmem:[%s0 + $0x98] sm:$0xf]
  %v59 = vld [vmem:[%s0 + $0x9c] sm:$0xff]
  %v60 = vld [vmem:[%s0 + $0xa4] sm:$0xf]
  %v61 = vld [vmem:[%s0 + $0xa8] sm:$0xff]
  %v62 = vld [vmem:[%s0 + $0xb0] sm:$0xf]
  %v63 = vld [vmem:[%s0 + $0xb4] sm:$0xff]
  %v64 = vld [vmem:[%s0 + $0xbc] sm:$0xf]
  %v65 = vld [vmem:[%s1] sm:$0xf]
  %v66 = vld [vmem:[%s1 + $0x4] sm:$0xf]
  %v67 = vld [vmem:[%s1 + $0x8] sm:$0xf]
  %v68 = vld [vmem:[%s1 + $0xc] sm:$0xf]
  %v69 = vld [vmem:[%s1 + $0x10] sm:$0xf]
  %v70 = vld [vmem:[%s1 + $0x14] sm:$0xf]
  %v71 = vld [vmem:[%s1 + $0x18] sm:$0xf]
  %v72 = vld [vmem:[%s1 + $0x1c] sm:$0xf]
  %v73 = vld [vmem:[%s1 + $0x20] sm:$0xf]
  %v74 = vld [vmem:[%s1 + $0x24] sm:$0xf]
  %v75 = vld [vmem:[%s1 + $0x28] sm:$0xf]
  %v76 = vld [vmem:[%s1 + $0x2c] sm:$0xf]
  %v77 = vld [vmem:[%s1 + $0x30] sm:$0xf]
  %v78 = vld [vmem:[%s1 + $0x34] sm:$0xf]
  %v79 = vld [vmem:[%s1 + $0x38] sm:$0xf]
  %v80 = vld [vmem:[%s1 + $0x3c] sm:$0xf]
  %v81 = vld [vmem:[%s1 + $0x40] sm:$0xf]
  %v82 = vld [vmem:[%s1 + $0x44] sm:$0xf]
  %v83 = vld [vmem:[%s1 + $0x48] sm:$0xf]
  %v84 = vld [vmem:[%s1 + $0x4c] sm:$0xf]
  %v85 = vld [vmem:[%s1 + $0x50] sm:$0xf]
  %v86 = vld [vmem:[%s1 + $0x54] sm:$0xf]
  %v87 = vld [vmem:[%s1 + $0x58] sm:$0xf]
  %v88 = vld [vmem:[%s1 + $0x5c] sm:$0xf]
  %v89 = vld [vmem:[%s1 + $0x60] sm:$0xf]
  %v90 = vld [vmem:[%s1 + $0x64] sm:$0xf]
  %v91 = vld [vmem:[%s1 + $0x68] sm:$0xf]
  %v92 = vld [vmem:[%s1 + $0x6c] sm:$0xf]
  %v93 = vld [vmem:[%s1 + $0x70] sm:$0xf]
  %v94 = vld [vmem:[%s1 + $0x74] sm:$0xf]
  %v95 = vld [vmem:[%s1 + $0x78] sm:$0xf]
  %v96 = vld [vmem:[%s1 + $0x7c] sm:$0xf]
  %v97 = vld [vmem:[%s1 + $0x80] sm:$0xf]
  %v98 = vld [vmem:[%s1 + $0x84] sm:$0xf]
  %v99 = vld [vmem:[%s1 + $0x88] sm:$0xf]
  %v100 = vld [vmem:[%s1 + $0x8c] sm:$0xf]
  %v101 = vld [vmem:[%s2] sm:$0x1]
  %v103 = vlaneseq
  %v104 = vshrl.u32 %v103, 7
  %v105 = vsub.s32 0, %v104
  %v106 = vrot.slane %v101, %v105
  %v140 = vunpack.c.l.b16 %v33
  %v141 = vunpack.c.h.b16 %v33
  %v142 = vunpack.c.l.b16 %v34
  %v143 = vunpack.c.l.b16 %v35
  %v144 = vunpack.c.h.b16 %v35
  %v145 = vunpack.c.l.b16 %v36
  %v146 = vunpack.c.l.b16 %v37
  %v147 = vunpack.c.h.b16 %v37
  %v148 = vunpack.c.l.b16 %v38
  %v149 = vunpack.c.l.b16 %v39
  %v150 = vunpack.c.h.b16 %v39
  %v151 = vunpack.c.l.b16 %v40
  %v152 = vunpack.c.l.b16 %v41
  %v153 = vunpack.c.h.b16 %v41
  %v154 = vunpack.c.l.b16 %v42
  %v155 = vunpack.c.l.b16 %v43
  %v156 = vunpack.c.h.b16 %v43
  %v157 = vunpack.c.l.b16 %v44
  %v158 = vunpack.c.l.b16 %v45
  %v159 = vunpack.c.h.b16 %v45
  %v160 = vunpack.c.l.b16 %v46
  %v161 = vunpack.c.l.b16 %v47
  %v162 = vunpack.c.h.b16 %v47
  %v163 = vunpack.c.l.b16 %v48
  %v164 = vunpack.c.l.b16 %v49
  %v165 = vunpack.c.h.b16 %v49
  %v166 = vunpack.c.l.b16 %v50
  %v167 = vunpack.c.l.b16 %v51
  %v168 = vunpack.c.h.b16 %v51
  %v169 = vunpack.c.l.b16 %v52
  %v170 = vunpack.c.l.b16 %v53
  %v171 = vunpack.c.h.b16 %v53
  %v172 = vunpack.c.l.b16 %v54
  %v173 = vunpack.c.l.b16 %v55
  %v174 = vunpack.c.h.b16 %v55
  %v175 = vunpack.c.l.b16 %v56
  %v176 = vunpack.c.l.b16 %v57
  %v177 = vunpack.c.h.b16 %v57
  %v178 = vunpack.c.l.b16 %v58
  %v179 = vunpack.c.l.b16 %v59
  %v180 = vunpack.c.h.b16 %v59
  %v181 = vunpack.c.l.b16 %v60
  %v182 = vunpack.c.l.b16 %v61
  %v183 = vunpack.c.h.b16 %v61
  %v184 = vunpack.c.l.b16 %v62
  %v185 = vunpack.c.l.b16 %v63
  %v186 = vunpack.c.h.b16 %v63
  %v187 = vunpack.c.l.b16 %v64
  %v188 = vpack.c.b16 %v143, %v140
  %v189 = vpack.c.b16 %v144, %v141
  %v190 = vpack.c.b16 %v145, %v142
  %v191 = vpack.c.b16 %v149, %v146
  %v192 = vpack.c.b16 %v150, %v147
  %v193 = vpack.c.b16 %v151, %v148
  %v194 = vpack.c.b16 %v155, %v152
  %v195 = vpack.c.b16 %v156, %v153
  %v196 = vpack.c.b16 %v157, %v154
  %v197 = vpack.c.b16 %v161, %v158
  %v198 = vpack.c.b16 %v162, %v159
  %v199 = vpack.c.b16 %v163, %v160
  %v200 = vpack.c.b16 %v167, %v164
  %v201 = vpack.c.b16 %v168, %v165
  %v202 = vpack.c.b16 %v169, %v166
  %v203 = vpack.c.b16 %v173, %v170
  %v204 = vpack.c.b16 %v174, %v171
  %v205 = vpack.c.b16 %v175, %v172
  %v206 = vpack.c.b16 %v179, %v176
  %v207 = vpack.c.b16 %v180, %v177
  %v208 = vpack.c.b16 %v181, %v178
  %v209 = vpack.c.b16 %v185, %v182
  %v210 = vpack.c.b16 %v186, %v183
  %v211 = vpack.c.b16 %v187, %v184
  %v264 = vunpack.c.l.b16 %v65
  %v265 = vunpack.c.l.b16 %v66
  %v266 = vunpack.c.l.b16 %v67
  %v267 = vunpack.c.l.b16 %v68
  %v268 = vunpack.c.l.b16 %v69
  %v269 = vunpack.c.l.b16 %v70
  %v270 = vunpack.c.l.b16 %v71
  %v271 = vunpack.c.l.b16 %v72
  %v272 = vunpack.c.l.b16 %v73
  %v273 = vunpack.c.l.b16 %v74
  %v274 = vunpack.c.l.b16 %v75
  %v275 = vunpack.c.l.b16 %v76
  %v276 = vunpack.c.l.b16 %v77
  %v277 = vunpack.c.l.b16 %v78
  %v278 = vunpack.c.l.b16 %v79
  %v279 = vunpack.c.l.b16 %v80
  %v280 = vunpack.c.l.b16 %v81
  %v281 = vunpack.c.l.b16 %v82
  %v282 = vunpack.c.l.b16 %v83
  %v283 = vunpack.c.l.b16 %v84
  %v284 = vunpack.c.l.b16 %v85
  %v285 = vunpack.c.l.b16 %v86
  %v286 = vunpack.c.l.b16 %v87
  %v287 = vunpack.c.l.b16 %v88
  %v288 = vunpack.c.l.b16 %v89
  %v289 = vunpack.c.l.b16 %v90
  %v290 = vunpack.c.l.b16 %v91
  %v291 = vunpack.c.l.b16 %v92
  %v292 = vunpack.c.l.b16 %v93
  %v293 = vunpack.c.l.b16 %v94
  %v294 = vunpack.c.l.b16 %v95
  %v295 = vunpack.c.l.b16 %v96
  %v296 = vunpack.c.l.b16 %v97
  %v297 = vunpack.c.l.b16 %v98
  %v298 = vunpack.c.l.b16 %v99
  %v299 = vunpack.c.l.b16 %v100
  %v300 = vpack.c.b16 %v265, %v264
  %v301 = vpack.c.b16 %v267, %v266
  %v302 = vpack.c.b16 %v269, %v268
  %v303 = vpack.c.b16 %v271, %v270
  %v304 = vpack.c.b16 %v273, %v272
  %v305 = vpack.c.b16 %v275, %v274
  %v306 = vpack.c.b16 %v277, %v276
  %v307 = vpack.c.b16 %v279, %v278
  %v308 = vpack.c.b16 %v281, %v280
  %v309 = vpack.c.b16 %v283, %v282
  %v310 = vpack.c.b16 %v285, %v284
  %v311 = vpack.c.b16 %v287, %v286
  %v312 = vpack.c.b16 %v289, %v288
  %v313 = vpack.c.b16 %v291, %v290
  %v314 = vpack.c.b16 %v293, %v292
  %v315 = vpack.c.b16 %v295, %v294
  %v316 = vpack.c.b16 %v297, %v296
  %v317 = vpack.c.b16 %v299, %v298
  %vm336 = vcmask 261120
  %v338 = vsel %vm336, %v190, 0
  %v341 = vsel %vm336, %v193, 0
  %v344 = vsel %vm336, %v196, 0
  %v347 = vsel %vm336, %v199, 0
  %v350 = vsel %vm336, %v202, 0
  %v353 = vsel %vm336, %v205, 0
  %v356 = vsel %vm336, %v208, 0
  %v359 = vsel %vm336, %v211, 0
  %361 = vmatprep.subr.bf16.mxu0 0
  %362 = vmatpush1.bf16.msra.mxu0 %v300
  %363 = vmatprep.subr.bf16.mxu0 0
  %364 = vmatpush1.bf16.msra.mxu0 %v301
  %365 = vmatprep.subr.bf16.mxu0 0
  %366 = vmatpush1.bf16.msra.mxu0 %v302
  %367 = vmatprep.subr.bf16.mxu0 0
  %368 = vmatpush1.bf16.msra.mxu0 %v303
  %369 = vmatprep.subr.bf16.mxu0 0
  %370 = vmatpush1.bf16.msra.mxu0 %v304
  %371 = vmatprep.subr.bf16.mxu0 0
  %372 = vmatpush1.bf16.msra.mxu0 %v305
  %373 = vmatprep.subr.bf16.mxu0 0
  %374 = vmatpush1.bf16.msra.mxu0 %v306
  %375 = vmatprep.subr.bf16.mxu0 0
  %376 = vmatpush1.bf16.msra.mxu0 %v307
  %377 = vmatprep.subr.bf16.mxu0 0
  %378 = vmatpush1.bf16.msra.mxu0 %v308
  %379 = vmatprep.subr.bf16.mxu0 0
  %380 = vmatpush1.bf16.msra.mxu0 %v309
  %381 = vmatprep.subr.bf16.mxu0 0
  %382 = vmatpush1.bf16.msra.mxu0 %v310
  %383 = vmatprep.subr.bf16.mxu0 0
  %384 = vmatpush1.bf16.msra.mxu0 %v311
  %385 = vmatprep.subr.bf16.mxu0 0
  %386 = vmatpush1.bf16.msra.mxu0 %v312
  %387 = vmatprep.subr.bf16.mxu0 0
  %388 = vmatpush1.bf16.msra.mxu0 %v313
  %389 = vmatprep.subr.bf16.mxu0 0
  %390 = vmatpush1.bf16.msra.mxu0 %v314
  %391 = vmatprep.subr.bf16.mxu0 0
  %392 = vmatpush1.bf16.msra.mxu0 %v315
  %393 = vmatprep.mubr.bf16.mxu0 %v189
  %394 = vmatmul.mubr.bf16.gmra.mrb[0].mxu0 %v188
  %v395 = vpop.f32.mrb[0].mxu0
  %v396 = vadd.f32 %v106, %v395
  %v397 = vpop.f32.mrb[0].mxu0
  %v398 = vpop.f32.mrb[0].mxu0
  %v399 = vadd.f32 %v106, %v398
  %v400 = vpop.f32.mrb[0].mxu0
  %401 = vmatprep.mubr.bf16.mxu0 %v192
  %402 = vmatmul.mubr.bf16.gmra.mrb[0].mxu0 %v191
  %v403 = vpop.f32.mrb[0].mxu0
  %v404 = vadd.f32 %v106, %v403
  %v405 = vpop.f32.mrb[0].mxu0
  %v406 = vpop.f32.mrb[0].mxu0
  %v407 = vadd.f32 %v106, %v406
  %v408 = vpop.f32.mrb[0].mxu0
  %409 = vmatprep.mubr.bf16.mxu0 %v195
  %410 = vmatmul.mubr.bf16.gmra.mrb[0].mxu0 %v194
  %v411 = vpop.f32.mrb[0].mxu0
  %v412 = vadd.f32 %v106, %v411
  %v413 = vpop.f32.mrb[0].mxu0
  %v414 = vpop.f32.mrb[0].mxu0
  %v415 = vadd.f32 %v106, %v414
  %v416 = vpop.f32.mrb[0].mxu0
  %417 = vmatprep.mubr.bf16.mxu0 %v198
  %418 = vmatmul.mubr.bf16.gmra.mrb[0].mxu0 %v197
  %v419 = vpop.f32.mrb[0].mxu0
  %v420 = vadd.f32 %v106, %v419
  %v421 = vpop.f32.mrb[0].mxu0
  %v422 = vpop.f32.mrb[0].mxu0
  %v423 = vadd.f32 %v106, %v422
  %v424 = vpop.f32.mrb[0].mxu0
  %425 = vmatprep.mubr.bf16.mxu0 %v201
  %426 = vmatmul.mubr.bf16.gmra.mrb[0].mxu0 %v200
  %v427 = vpop.f32.mrb[0].mxu0
  %v428 = vadd.f32 %v106, %v427
  %v429 = vpop.f32.mrb[0].mxu0
  %v430 = vpop.f32.mrb[0].mxu0
  %v431 = vadd.f32 %v106, %v430
  %v432 = vpop.f32.mrb[0].mxu0
  %433 = vmatprep.mubr.bf16.mxu0 %v204
  %434 = vmatmul.mubr.bf16.gmra.mrb[0].mxu0 %v203
  %v435 = vpop.f32.mrb[0].mxu0
  %v436 = vadd.f32 %v106, %v435
  %v437 = vpop.f32.mrb[0].mxu0
  %v438 = vpop.f32.mrb[0].mxu0
  %v439 = vadd.f32 %v106, %v438
  %v440 = vpop.f32.mrb[0].mxu0
  %441 = vmatprep.mubr.bf16.mxu0 %v207
  %442 = vmatmul.mubr.bf16.gmra.mrb[0].mxu0 %v206
  %v443 = vpop.f32.mrb[0].mxu0
  %v444 = vadd.f32 %v106, %v443
  %v445 = vpop.f32.mrb[0].mxu0
  %v446 = vpop.f32.mrb[0].mxu0
  %v447 = vadd.f32 %v106, %v446
  %v448 = vpop.f32.mrb[0].mxu0
  %449 = vmatprep.mubr.bf16.mxu0 %v210
  %450 = vmatmul.mubr.bf16.gmra.mrb[0].mxu0 %v209
  %v451 = vpop.f32.mrb[0].mxu0
  %v452 = vadd.f32 %v106, %v451
  %v453 = vpop.f32.mrb[0].mxu0
  %v454 = vpop.f32.mrb[0].mxu0
  %v455 = vadd.f32 %v106, %v454
  %v456 = vpop.f32.mrb[0].mxu0
  %457 = vdwg.mxu0
  %458 = vmatprep.subr.bf16.mxu0 0
  %459 = vmatpush1.bf16.msra.mxu0 %v316
  %460 = vmatprep.subr.bf16.mxu0 0
  %461 = vmatpush1.bf16.msra.mxu0 %v317
  %462 = vmatprep.subr.bf16.mxu0 0
  %463 = vmatpush1.bf16.msra.mxu0 0
  %464 = vmatprep.subr.bf16.mxu0 0
  %465 = vmatpush1.bf16.msra.mxu0 0
  %466 = vmatprep.subr.bf16.mxu0 0
  %467 = vmatpush1.bf16.msra.mxu0 0
  %468 = vmatprep.subr.bf16.mxu0 0
  %469 = vmatpush1.bf16.msra.mxu0 0
  %470 = vmatprep.subr.bf16.mxu0 0
  %471 = vmatpush1.bf16.msra.mxu0 0
  %472 = vmatprep.subr.bf16.mxu0 0
  %473 = vmatpush1.bf16.msra.mxu0 0
  %474 = vmatprep.subr.bf16.mxu0 0
  %475 = vmatpush1.bf16.msra.mxu0 0
  %476 = vmatprep.subr.bf16.mxu0 0
  %477 = vmatpush1.bf16.msra.mxu0 0
  %478 = vmatprep.subr.bf16.mxu0 0
  %479 = vmatpush1.bf16.msra.mxu0 0
  %480 = vmatprep.subr.bf16.mxu0 0
  %481 = vmatpush1.bf16.msra.mxu0 0
  %482 = vmatprep.subr.bf16.mxu0 0
  %483 = vmatpush1.bf16.msra.mxu0 0
  %484 = vmatprep.subr.bf16.mxu0 0
  %485 = vmatpush1.bf16.msra.mxu0 0
  %486 = vmatprep.subr.bf16.mxu0 0
  %487 = vmatpush1.bf16.msra.mxu0 0
  %488 = vmatprep.subr.bf16.mxu0 0
  %489 = vmatpush1.bf16.msra.mxu0 0
  %490 = vmatprep.mubr.bf16.mxu0 0
  %491 = vmatmul.mubr.bf16.gmra.mrb[0].mxu0 %v338
  %v492 = vpop.f32.mrb[0].mxu0
  %v493 = vadd.f32 %v396, %v492
  %v494 = vpop.f32.mrb[0].mxu0
  %v495 = vpop.f32.mrb[0].mxu0
  %v496 = vadd.f32 %v399, %v495
  %v497 = vpop.f32.mrb[0].mxu0
  %498 = vmatprep.mubr.bf16.mxu0 0
  %499 = vmatmul.mubr.bf16.gmra.mrb[0].mxu0 %v341
  %v500 = vpop.f32.mrb[0].mxu0
  %v501 = vadd.f32 %v404, %v500
  %v502 = vpop.f32.mrb[0].mxu0
  %v503 = vpop.f32.mrb[0].mxu0
  %v504 = vadd.f32 %v407, %v503
  %v505 = vpop.f32.mrb[0].mxu0
  %506 = vmatprep.mubr.bf16.mxu0 0
  %507 = vmatmul.mubr.bf16.gmra.mrb[0].mxu0 %v344
  %v508 = vpop.f32.mrb[0].mxu0
  %v509 = vadd.f32 %v412, %v508
  %v510 = vpop.f32.mrb[0].mxu0
  %v511 = vpop.f32.mrb[0].mxu0
  %v512 = vadd.f32 %v415, %v511
  %v513 = vpop.f32.mrb[0].mxu0
  %514 = vmatprep.mubr.bf16.mxu0 0
  %515 = vmatmul.mubr.bf16.gmra.mrb[0].mxu0 %v347
  %v516 = vpop.f32.mrb[0].mxu0
  %v517 = vadd.f32 %v420, %v516
  %v518 = vpop.f32.mrb[0].mxu0
  %v519 = vpop.f32.mrb[0].mxu0
  %v520 = vadd.f32 %v423, %v519
  %v521 = vpop.f32.mrb[0].mxu0
  %522 = vmatprep.mubr.bf16.mxu0 0
  %523 = vmatmul.mubr.bf16.gmra.mrb[0].mxu0 %v350
  %v524 = vpop.f32.mrb[0].mxu0
  %v525 = vadd.f32 %v428, %v524
  %v526 = vpop.f32.mrb[0].mxu0
  %v527 = vpop.f32.mrb[0].mxu0
  %v528 = vadd.f32 %v431, %v527
  %v529 = vpop.f32.mrb[0].mxu0
  %530 = vmatprep.mubr.bf16.mxu0 0
  %531 = vmatmul.mubr.bf16.gmra.mrb[0].mxu0 %v353
  %v532 = vpop.f32.mrb[0].mxu0
  %v533 = vadd.f32 %v436, %v532
  %v534 = vpop.f32.mrb[0].mxu0
  %v535 = vpop.f32.mrb[0].mxu0
  %v536 = vadd.f32 %v439, %v535
  %v537 = vpop.f32.mrb[0].mxu0
  %538 = vmatprep.mubr.bf16.mxu0 0
  %539 = vmatmul.mubr.bf16.gmra.mrb[0].mxu0 %v356
  %v540 = vpop.f32.mrb[0].mxu0
  %v541 = vadd.f32 %v444, %v540
  %v542 = vpop.f32.mrb[0].mxu0
  %v543 = vpop.f32.mrb[0].mxu0
  %v544 = vadd.f32 %v447, %v543
  %v545 = vpop.f32.mrb[0].mxu0
  %546 = vmatprep.mubr.bf16.mxu0 0
  %547 = vmatmul.mubr.bf16.gmra.mrb[0].mxu0 %v359
  %v548 = vpop.f32.mrb[0].mxu0
  %v549 = vadd.f32 %v452, %v548
  %v550 = vpop.f32.mrb[0].mxu0
  %v551 = vpop.f32.mrb[0].mxu0
  %v552 = vadd.f32 %v455, %v551
  %v553 = vpop.f32.mrb[0].mxu0
  %554 = vdwg.mxu0
  %v555 = vmax.f32 %v493, 0.0
  %v556 = vmax.f32 %v496, 0.0
  %v557 = vmax.f32 %v501, 0.0
  %v558 = vmax.f32 %v504, 0.0
  %v559 = vmax.f32 %v509, 0.0
  %v560 = vmax.f32 %v512, 0.0
  %v561 = vmax.f32 %v517, 0.0
  %v562 = vmax.f32 %v520, 0.0
  %v563 = vmax.f32 %v525, 0.0
  %v564 = vmax.f32 %v528, 0.0
  %v565 = vmax.f32 %v533, 0.0
  %v566 = vmax.f32 %v536, 0.0
  %v567 = vmax.f32 %v541, 0.0
  %v568 = vmax.f32 %v544, 0.0
  %v569 = vmax.f32 %v549, 0.0
  %v570 = vmax.f32 %v552, 0.0
  %v571 = vpack.c.bf16 %v556, %v555
  %v572 = vpack.c.bf16 %v558, %v557
  %v573 = vpack.c.bf16 %v560, %v559
  %v574 = vpack.c.bf16 %v562, %v561
  %v575 = vpack.c.bf16 %v564, %v563
  %v576 = vpack.c.bf16 %v566, %v565
  %v577 = vpack.c.bf16 %v568, %v567
  %v578 = vpack.c.bf16 %v570, %v569
  %579 = vst [vmem:[#allocation2] sm:$0xff] %v571
  %580 = vst [vmem:[#allocation2 + $0x8] sm:$0xff] %v572
  %581 = vst [vmem:[#allocation2 + $0x10] sm:$0xff] %v573
  %582 = vst [vmem:[#allocation2 + $0x18] sm:$0xff] %v574
  %583 = vst [vmem:[#allocation2 + $0x20] sm:$0xff] %v575
  %584 = vst [vmem:[#allocation2 + $0x28] sm:$0xff] %v576
  %585 = vst [vmem:[#allocation2 + $0x30] sm:$0xff] %v577
  %586 = vst [vmem:[#allocation2 + $0x38] sm:$0xff] %v578
  %v587 = vld [vmem:[#allocation2] sm:$0xff]
  %v588 = vld [vmem:[#allocation2 + $0x8] sm:$0xff]
  %v589 = vld [vmem:[#allocation2 + $0x10] sm:$0xff]
  %v590 = vld [vmem:[#allocation2 + $0x18] sm:$0xff]
  %v591 = vld [vmem:[#allocation2 + $0x20] sm:$0xff]
  %v592 = vld [vmem:[#allocation2 + $0x28] sm:$0xf]
  %v593 = vld [vmem:[%s3] sm:$0xf]
  %v594 = vld [vmem:[%s3 + $0x4] sm:$0xf]
  %v595 = vld [vmem:[%s3 + $0x8] sm:$0xf]
  %v596 = vld [vmem:[%s3 + $0xc] sm:$0xf]
  %v597 = vld [vmem:[%s3 + $0x10] sm:$0xf]
  %v598 = vld [vmem:[%s3 + $0x14] sm:$0xf]
  %v599 = vld [vmem:[%s3 + $0x18] sm:$0xf]
  %v600 = vld [vmem:[%s3 + $0x1c] sm:$0xf]
  %v601 = vld [vmem:[%s3 + $0x20] sm:$0xf]
  %v602 = vld [vmem:[%s3 + $0x24] sm:$0xf]
  %v603 = vld [vmem:[%s3 + $0x28] sm:$0xf]
  %v604 = vld [vmem:[%s3 + $0x2c] sm:$0xf]
  %v605 = vld [vmem:[%s3 + $0x30] sm:$0xf]
  %v606 = vld [vmem:[%s3 + $0x34] sm:$0xf]
  %v607 = vld [vmem:[%s3 + $0x38] sm:$0xf]
  %v608 = vld [vmem:[%s3 + $0x3c] sm:$0xf]
  %v609 = vld [vmem:[#allocation2] sm:$0xf0]
  %v610 = vld [vmem:[#allocation2 + $0x28] sm:$0xff]
  %s611 = scalar_lea.vmem %s3, 64
  %v612 = vld [vmem:[%s611] sm:$0xf]
  %v613 = vld [vmem:[%s611 + $0x4] sm:$0xf]
  %v614 = vld [vmem:[%s611 + $0x8] sm:$0xf]
  %v615 = vld [vmem:[%s611 + $0xc] sm:$0xf]
  %v616 = vld [vmem:[%s611 + $0x10] sm:$0xf]
  %v617 = vld [vmem:[%s611 + $0x14] sm:$0xf]
  %v618 = vld [vmem:[%s611 + $0x18] sm:$0xf]
  %v619 = vld [vmem:[%s611 + $0x1c] sm:$0xf]
  %v620 = vld [vmem:[%s611 + $0x20] sm:$0xf]
  %v621 = vld [vmem:[%s611 + $0x24] sm:$0xf]
  %v622 = vld [vmem:[%s611 + $0x28] sm:$0xf]
  %v623 = vld [vmem:[%s611 + $0x2c] sm:$0xf]
  %v624 = vld [vmem:[%s611 + $0x30] sm:$0xf]
  %v625 = vld [vmem:[%s611 + $0x34] sm:$0xf]
  %v626 = vld [vmem:[%s611 + $0x38] sm:$0xf]
  %v627 = vld [vmem:[%s611 + $0x3c] sm:$0xf]
  %vm634 = vcmask 1043456
  %v635 = vrot.slane %v609, 4
  %v636 = vrot.slane %v588, 4
  %v637 = vsel %vm634, %v635, %v636
  %v638 = vrot.slane %v589, 4
  %v639 = vsel %vm634, %v636, %v638
  %v640 = vrot.slane %v590, 4
  %v641 = vsel %vm634, %v638, %v640
  %v642 = vrot.slane %v591, 4
  %v643 = vsel %vm634, %v640, %v642
  %v644 = vrot.slane %v610, 4
  %v645 = vsel %vm634, %v642, %v644
  %v668 = vunpack.c.l.b16 %v612
  %v669 = vunpack.c.l.b16 %v613
  %v670 = vunpack.c.l.b16 %v614
  %v671 = vunpack.c.l.b16 %v615
  %v672 = vunpack.c.l.b16 %v616
  %v673 = vunpack.c.l.b16 %v617
  %v674 = vunpack.c.l.b16 %v618
  %v675 = vunpack.c.l.b16 %v619
  %v676 = vunpack.c.l.b16 %v620
  %v677 = vunpack.c.l.b16 %v621
  %v678 = vunpack.c.l.b16 %v622
  %v679 = vunpack.c.l.b16 %v623
  %v680 = vunpack.c.l.b16 %v624
  %v681 = vunpack.c.l.b16 %v625
  %v682 = vunpack.c.l.b16 %v626
  %v683 = vunpack.c.l.b16 %v627
  %v684 = vpack.c.b16 %v669, %v668
  %v685 = vpack.c.b16 %v671, %v670
  %v686 = vpack.c.b16 %v673, %v672
  %v687 = vpack.c.b16 %v675, %v674
  %v688 = vpack.c.b16 %v677, %v676
  %v689 = vpack.c.b16 %v679, %v678
  %v690 = vpack.c.b16 %v681, %v680
  %v691 = vpack.c.b16 %v683, %v682
  %700 = vmatprep.subr.bf16.mxu0 0
  %701 = vmatpush1.bf16.msra.mxu0 %v684
  %702 = vmatprep.subr.bf16.mxu0 0
  %703 = vmatpush1.bf16.msra.mxu0 %v685
  %704 = vmatprep.subr.bf16.mxu0 0
  %705 = vmatpush1.bf16.msra.mxu0 %v686
  %706 = vmatprep.subr.bf16.mxu0 0
  %707 = vmatpush1.bf16.msra.mxu0 %v687
  %708 = vmatprep.subr.bf16.mxu0 0
  %709 = vmatpush1.bf16.msra.mxu0 %v688
  %710 = vmatprep.subr.bf16.mxu0 0
  %711 = vmatpush1.bf16.msra.mxu0 %v689
  %712 = vmatprep.subr.bf16.mxu0 0
  %713 = vmatpush1.bf16.msra.mxu0 %v690
  %714 = vmatprep.subr.bf16.mxu0 0
  %715 = vmatpush1.bf16.msra.mxu0 %v691
  %716 = vmatprep.subr.bf16.mxu0 0
  %717 = vmatpush1.bf16.msra.mxu0 0
  %718 = vmatprep.subr.bf16.mxu0 0
  %719 = vmatpush1.bf16.msra.mxu0 0
  %720 = vmatprep.subr.bf16.mxu0 0
  %721 = vmatpush1.bf16.msra.mxu0 0
  %722 = vmatprep.subr.bf16.mxu0 0
  %723 = vmatpush1.bf16.msra.mxu0 0
  %724 = vmatprep.subr.bf16.mxu0 0
  %725 = vmatpush1.bf16.msra.mxu0 0
  %726 = vmatprep.subr.bf16.mxu0 0
  %727 = vmatpush1.bf16.msra.mxu0 0
  %728 = vmatprep.subr.bf16.mxu0 0
  %729 = vmatpush1.bf16.msra.mxu0 0
  %730 = vmatprep.subr.bf16.mxu0 0
  %731 = vmatpush1.bf16.msra.mxu0 0
  %732 = vmatprep.mubr.bf16.mxu0 0
  %733 = vmatmul.mubr.bf16.gmra.mrb[0].mxu0 %v637
  %v734 = vpop.f32.mrb[0].mxu0
  %v735 = vadd.f32 0.0, %v734
  %v736 = vpop.f32.mrb[0].mxu0
  %v737 = vpop.f32.mrb[0].mxu0
  %v738 = vadd.f32 0.0, %v737
  %v739 = vpop.f32.mrb[0].mxu0
  %740 = vmatprep.mubr.bf16.mxu0 0
  %741 = vmatmul.mubr.bf16.gmra.mrb[0].mxu0 %v639
  %v742 = vpop.f32.mrb[0].mxu0
  %v743 = vadd.f32 0.0, %v742
  %v744 = vpop.f32.mrb[0].mxu0
  %v745 = vpop.f32.mrb[0].mxu0
  %v746 = vadd.f32 0.0, %v745
  %v747 = vpop.f32.mrb[0].mxu0
  %748 = vmatprep.mubr.bf16.mxu0 0
  %749 = vmatmul.mubr.bf16.gmra.mrb[0].mxu0 %v641
  %v750 = vpop.f32.mrb[0].mxu0
  %v751 = vadd.f32 0.0, %v750
  %v752 = vpop.f32.mrb[0].mxu0
  %v753 = vpop.f32.mrb[0].mxu0
  %v754 = vadd.f32 0.0, %v753
  %v755 = vpop.f32.mrb[0].mxu0
  %756 = vmatprep.mubr.bf16.mxu0 0
  %757 = vmatmul.mubr.bf16.gmra.mrb[0].mxu0 %v643
  %v758 = vpop.f32.mrb[0].mxu0
  %v759 = vadd.f32 0.0, %v758
  %v760 = vpop.f32.mrb[0].mxu0
  %v761 = vpop.f32.mrb[0].mxu0
  %v762 = vadd.f32 0.0, %v761
  %v763 = vpop.f32.mrb[0].mxu0
  %764 = vmatprep.mubr.bf16.mxu0 0
  %765 = vmatmul.mubr.bf16.gmra.mrb[0].mxu0 %v645
  %v766 = vpop.f32.mrb[0].mxu0
  %v767 = vadd.f32 0.0, %v766
  %v768 = vpop.f32.mrb[0].mxu0
  %v769 = vpop.f32.mrb[0].mxu0
  %v770 = vadd.f32 0.0, %v769
  %v771 = vpop.f32.mrb[0].mxu0
  %772 = vmatprep.mubr.bf16.mxu0 0
  %773 = vmatmul.mubr.bf16.gmra.mrb[0].mxu0 %v644
  %v774 = vpop.f32.mrb[0].mxu0
  %v775 = vadd.f32 0.0, %v774
  %v776 = vpop.f32.mrb[0].mxu0
  %v777 = vpop.f32.mrb[0].mxu0
  %v778 = vpop.f32.mrb[0].mxu0
  %779 = vdwg.mxu0
  %v796 = vunpack.c.l.b16 %v593
  %v797 = vunpack.c.l.b16 %v594
  %v798 = vunpack.c.l.b16 %v595
  %v799 = vunpack.c.l.b16 %v596
  %v800 = vunpack.c.l.b16 %v597
  %v801 = vunpack.c.l.b16 %v598
  %v802 = vunpack.c.l.b16 %v599
  %v803 = vunpack.c.l.b16 %v600
  %v804 = vunpack.c.l.b16 %v601
  %v805 = vunpack.c.l.b16 %v602
  %v806 = vunpack.c.l.b16 %v603
  %v807 = vunpack.c.l.b16 %v604
  %v808 = vunpack.c.l.b16 %v605
  %v809 = vunpack.c.l.b16 %v606
  %v810 = vunpack.c.l.b16 %v607
  %v811 = vunpack.c.l.b16 %v608
  %v812 = vpack.c.b16 %v797, %v796
  %v813 = vpack.c.b16 %v799, %v798
  %v814 = vpack.c.b16 %v801, %v800
  %v815 = vpack.c.b16 %v803, %v802
  %v816 = vpack.c.b16 %v805, %v804
  %v817 = vpack.c.b16 %v807, %v806
  %v818 = vpack.c.b16 %v809, %v808
  %v819 = vpack.c.b16 %v811, %v810
  %828 = vmatprep.subr.bf16.mxu0 0
  %829 = vmatpush1.bf16.msra.mxu0 %v812
  %830 = vmatprep.subr.bf16.mxu0 0
  %831 = vmatpush1.bf16.msra.mxu0 %v813
  %832 = vmatprep.subr.bf16.mxu0 0
  %833 = vmatpush1.bf16.msra.mxu0 %v814
  %834 = vmatprep.subr.bf16.mxu0 0
  %835 = vmatpush1.bf16.msra.mxu0 %v815
  %836 = vmatprep.subr.bf16.mxu0 0
  %837 = vmatpush1.bf16.msra.mxu0 %v816
  %838 = vmatprep.subr.bf16.mxu0 0
  %839 = vmatpush1.bf16.msra.mxu0 %v817
  %840 = vmatprep.subr.bf16.mxu0 0
  %841 = vmatpush1.bf16.msra.mxu0 %v818
  %842 = vmatprep.subr.bf16.mxu0 0
  %843 = vmatpush1.bf16.msra.mxu0 %v819
  %844 = vmatprep.subr.bf16.mxu0 0
  %845 = vmatpush1.bf16.msra.mxu0 0
  %846 = vmatprep.subr.bf16.mxu0 0
  %847 = vmatpush1.bf16.msra.mxu0 0
  %848 = vmatprep.subr.bf16.mxu0 0
  %849 = vmatpush1.bf16.msra.mxu0 0
  %850 = vmatprep.subr.bf16.mxu0 0
  %851 = vmatpush1.bf16.msra.mxu0 0
  %852 = vmatprep.subr.bf16.mxu0 0
  %853 = vmatpush1.bf16.msra.mxu0 0
  %854 = vmatprep.subr.bf16.mxu0 0
  %855 = vmatpush1.bf16.msra.mxu0 0
  %856 = vmatprep.subr.bf16.mxu0 0
  %857 = vmatpush1.bf16.msra.mxu0 0
  %858 = vmatprep.subr.bf16.mxu0 0
  %859 = vmatpush1.bf16.msra.mxu0 0
  %860 = vmatprep.mubr.bf16.mxu0 0
  %861 = vmatmul.mubr.bf16.gmra.mrb[0].mxu0 %v587
  %v862 = vpop.f32.mrb[0].mxu0
  %v863 = vadd.f32 %v735, %v862
  %v864 = vpop.f32.mrb[0].mxu0
  %v865 = vpop.f32.mrb[0].mxu0
  %v866 = vadd.f32 %v738, %v865
  %v867 = vpop.f32.mrb[0].mxu0
  %868 = vmatprep.mubr.bf16.mxu0 0
  %869 = vmatmul.mubr.bf16.gmra.mrb[0].mxu0 %v588
  %v870 = vpop.f32.mrb[0].mxu0
  %v871 = vadd.f32 %v743, %v870
  %v872 = vpop.f32.mrb[0].mxu0
  %v873 = vpop.f32.mrb[0].mxu0
  %v874 = vadd.f32 %v746, %v873
  %v875 = vpop.f32.mrb[0].mxu0
  %876 = vmatprep.mubr.bf16.mxu0 0
  %877 = vmatmul.mubr.bf16.gmra.mrb[0].mxu0 %v589
  %v878 = vpop.f32.mrb[0].mxu0
  %v879 = vadd.f32 %v751, %v878
  %v880 = vpop.f32.mrb[0].mxu0
  %v881 = vpop.f32.mrb[0].mxu0
  %v882 = vadd.f32 %v754, %v881
  %v883 = vpop.f32.mrb[0].mxu0
  %884 = vmatprep.mubr.bf16.mxu0 0
  %885 = vmatmul.mubr.bf16.gmra.mrb[0].mxu0 %v590
  %v886 = vpop.f32.mrb[0].mxu0
  %v887 = vadd.f32 %v759, %v886
  %v888 = vpop.f32.mrb[0].mxu0
  %v889 = vpop.f32.mrb[0].mxu0
  %v890 = vadd.f32 %v762, %v889
  %v891 = vpop.f32.mrb[0].mxu0
  %892 = vmatprep.mubr.bf16.mxu0 0
  %893 = vmatmul.mubr.bf16.gmra.mrb[0].mxu0 %v591
  %v894 = vpop.f32.mrb[0].mxu0
  %v895 = vadd.f32 %v767, %v894
  %v896 = vpop.f32.mrb[0].mxu0
  %v897 = vpop.f32.mrb[0].mxu0
  %v898 = vadd.f32 %v770, %v897
  %v899 = vpop.f32.mrb[0].mxu0
  %900 = vmatprep.mubr.bf16.mxu0 0
  %901 = vmatmul.mubr.bf16.gmra.mrb[0].mxu0 %v592
  %v902 = vpop.f32.mrb[0].mxu0
  %v903 = vadd.f32 %v775, %v902
  %v904 = vpop.f32.mrb[0].mxu0
  %v905 = vpop.f32.mrb[0].mxu0
  %v906 = vpop.f32.mrb[0].mxu0
  %907 = vdwg.mxu0
  %v908 = vld [vmem:[#allocation2 + $0x10] sm:$0xff]
  %v909 = vld [vmem:[#allocation2 + $0x18] sm:$0xff]
  %v910 = vld [vmem:[#allocation2 + $0x20] sm:$0xff]
  %v911 = vld [vmem:[#allocation2 + $0x28] sm:$0xff]
  %v912 = vld [vmem:[#allocation2 + $0x30] sm:$0xff]
  %v913 = vld [vmem:[#allocation2 + $0x38] sm:$0xf]
  %s914 = scalar_lea.vmem %s3, 128
  %v915 = vld [vmem:[%s914] sm:$0xf]
  %v916 = vld [vmem:[%s914 + $0x4] sm:$0xf]
  %v917 = vld [vmem:[%s914 + $0x8] sm:$0xf]
  %v918 = vld [vmem:[%s914 + $0xc] sm:$0xf]
  %v919 = vld [vmem:[%s914 + $0x10] sm:$0xf]
  %v920 = vld [vmem:[%s914 + $0x14] sm:$0xf]
  %v921 = vld [vmem:[%s914 + $0x18] sm:$0xf]
  %v922 = vld [vmem:[%s914 + $0x1c] sm:$0xf]
  %v923 = vld [vmem:[%s914 + $0x20] sm:$0xf]
  %v924 = vld [vmem:[%s914 + $0x24] sm:$0xf]
  %v925 = vld [vmem:[%s914 + $0x28] sm:$0xf]
  %v926 = vld [vmem:[%s914 + $0x2c] sm:$0xf]
  %v927 = vld [vmem:[%s914 + $0x30] sm:$0xf]
  %v928 = vld [vmem:[%s914 + $0x34] sm:$0xf]
  %v929 = vld [vmem:[%s914 + $0x38] sm:$0xf]
  %v930 = vld [vmem:[%s914 + $0x3c] sm:$0xf]
  %v947 = vunpack.c.l.b16 %v915
  %v948 = vunpack.c.l.b16 %v916
  %v949 = vunpack.c.l.b16 %v917
  %v950 = vunpack.c.l.b16 %v918
  %v951 = vunpack.c.l.b16 %v919
  %v952 = vunpack.c.l.b16 %v920
  %v953 = vunpack.c.l.b16 %v921
  %v954 = vunpack.c.l.b16 %v922
  %v955 = vunpack.c.l.b16 %v923
  %v956 = vunpack.c.l.b16 %v924
  %v957 = vunpack.c.l.b16 %v925
  %v958 = vunpack.c.l.b16 %v926
  %v959 = vunpack.c.l.b16 %v927
  %v960 = vunpack.c.l.b16 %v928
  %v961 = vunpack.c.l.b16 %v929
  %v962 = vunpack.c.l.b16 %v930
  %v963 = vpack.c.b16 %v948, %v947
  %v964 = vpack.c.b16 %v950, %v949
  %v965 = vpack.c.b16 %v952, %v951
  %v966 = vpack.c.b16 %v954, %v953
  %v967 = vpack.c.b16 %v956, %v955
  %v968 = vpack.c.b16 %v958, %v957
  %v969 = vpack.c.b16 %v960, %v959
  %v970 = vpack.c.b16 %v962, %v961
  %979 = vmatprep.subr.bf16.mxu0 0
  %980 = vmatpush1.bf16.msra.mxu0 %v963
  %981 = vmatprep.subr.bf16.mxu0 0
  %982 = vmatpush1.bf16.msra.mxu0 %v964
  %983 = vmatprep.subr.bf16.mxu0 0
  %984 = vmatpush1.bf16.msra.mxu0 %v965
  %985 = vmatprep.subr.bf16.mxu0 0
  %986 = vmatpush1.bf16.msra.mxu0 %v966
  %987 = vmatprep.subr.bf16.mxu0 0
  %988 = vmatpush1.bf16.msra.mxu0 %v967
  %989 = vmatprep.subr.bf16.mxu0 0
  %990 = vmatpush1.bf16.msra.mxu0 %v968
  %991 = vmatprep.subr.bf16.mxu0 0
  %992 = vmatpush1.bf16.msra.mxu0 %v969
  %993 = vmatprep.subr.bf16.mxu0 0
  %994 = vmatpush1.bf16.msra.mxu0 %v970
  %995 = vmatprep.subr.bf16.mxu0 0
  %996 = vmatpush1.bf16.msra.mxu0 0
  %997 = vmatprep.subr.bf16.mxu0 0
  %998 = vmatpush1.bf16.msra.mxu0 0
  %999 = vmatprep.subr.bf16.mxu0 0
  %1000 = vmatpush1.bf16.msra.mxu0 0
  %1001 = vmatprep.subr.bf16.mxu0 0
  %1002 = vmatpush1.bf16.msra.mxu0 0
  %1003 = vmatprep.subr.bf16.mxu0 0
  %1004 = vmatpush1.bf16.msra.mxu0 0
  %1005 = vmatprep.subr.bf16.mxu0 0
  %1006 = vmatpush1.bf16.msra.mxu0 0
  %1007 = vmatprep.subr.bf16.mxu0 0
  %1008 = vmatpush1.bf16.msra.mxu0 0
  %1009 = vmatprep.subr.bf16.mxu0 0
  %1010 = vmatpush1.bf16.msra.mxu0 0
  %1011 = vmatprep.mubr.bf16.mxu0 0
  %1012 = vmatmul.mubr.bf16.gmra.mrb[0].mxu0 %v908
  %v1013 = vpop.f32.mrb[0].mxu0
  %v1014 = vadd.f32 0.0, %v1013
  %v1015 = vpop.f32.mrb[0].mxu0
  %v1016 = vpop.f32.mrb[0].mxu0
  %v1017 = vadd.f32 0.0, %v1016
  %v1018 = vpop.f32.mrb[0].mxu0
  %1019 = vmatprep.mubr.bf16.mxu0 0
  %1020 = vmatmul.mubr.bf16.gmra.mrb[0].mxu0 %v909
  %v1021 = vpop.f32.mrb[0].mxu0
  %v1022 = vadd.f32 0.0, %v1021
  %v1023 = vpop.f32.mrb[0].mxu0
  %v1024 = vpop.f32.mrb[0].mxu0
  %v1025 = vadd.f32 0.0, %v1024
  %v1026 = vpop.f32.mrb[0].mxu0
  %1027 = vmatprep.mubr.bf16.mxu0 0
  %1028 = vmatmul.mubr.bf16.gmra.mrb[0].mxu0 %v910
  %v1029 = vpop.f32.mrb[0].mxu0
  %v1030 = vadd.f32 0.0, %v1029
  %v1031 = vpop.f32.mrb[0].mxu0
  %v1032 = vpop.f32.mrb[0].mxu0
  %v1033 = vadd.f32 0.0, %v1032
  %v1034 = vpop.f32.mrb[0].mxu0
  %1035 = vmatprep.mubr.bf16.mxu0 0
  %1036 = vmatmul.mubr.bf16.gmra.mrb[0].mxu0 %v911
  %v1037 = vpop.f32.mrb[0].mxu0
  %v1038 = vadd.f32 0.0, %v1037
  %v1039 = vpop.f32.mrb[0].mxu0
  %v1040 = vpop.f32.mrb[0].mxu0
  %v1041 = vadd.f32 0.0, %v1040
  %v1042 = vpop.f32.mrb[0].mxu0
  %1043 = vmatprep.mubr.bf16.mxu0 0
  %1044 = vmatmul.mubr.bf16.gmra.mrb[0].mxu0 %v912
  %v1045 = vpop.f32.mrb[0].mxu0
  %v1046 = vadd.f32 0.0, %v1045
  %v1047 = vpop.f32.mrb[0].mxu0
  %v1048 = vpop.f32.mrb[0].mxu0
  %v1049 = vadd.f32 0.0, %v1048
  %v1050 = vpop.f32.mrb[0].mxu0
  %1051 = vmatprep.mubr.bf16.mxu0 0
  %1052 = vmatmul.mubr.bf16.gmra.mrb[0].mxu0 %v913
  %v1053 = vpop.f32.mrb[0].mxu0
  %v1054 = vadd.f32 0.0, %v1053
  %v1055 = vpop.f32.mrb[0].mxu0
  %v1056 = vpop.f32.mrb[0].mxu0
  %v1057 = vpop.f32.mrb[0].mxu0
  %1058 = vdwg.mxu0
  %v1059 = vadd.f32 %v863, %v1014
  %v1060 = vadd.f32 %v866, %v1017
  %v1061 = vadd.f32 %v871, %v1022
  %v1062 = vadd.f32 %v874, %v1025
  %v1063 = vadd.f32 %v879, %v1030
  %v1064 = vadd.f32 %v882, %v1033
  %v1065 = vadd.f32 %v887, %v1038
  %v1066 = vadd.f32 %v890, %v1041
  %v1067 = vadd.f32 %v895, %v1046
  %v1068 = vadd.f32 %v898, %v1049
  %v1069 = vadd.f32 %v903, %v1054
  %v1070 = vld [vmem:[#allocation2 + $0x10] sm:$0xf0]
  %v1071 = vld [vmem:[#allocation2 + $0x38] sm:$0xff]
  %s1072 = scalar_lea.vmem %s3, 192
  %v1073 = vld [vmem:[%s1072] sm:$0xf]
  %v1074 = vld [vmem:[%s1072 + $0x4] sm:$0xf]
  %v1075 = vld [vmem:[%s1072 + $0x8] sm:$0xf]
  %v1076 = vld [vmem:[%s1072 + $0xc] sm:$0xf]
  %v1077 = vld [vmem:[%s1072 + $0x10] sm:$0xf]
  %v1078 = vld [vmem:[%s1072 + $0x14] sm:$0xf]
  %v1079 = vld [vmem:[%s1072 + $0x18] sm:$0xf]
  %v1080 = vld [vmem:[%s1072 + $0x1c] sm:$0xf]
  %v1081 = vld [vmem:[%s1072 + $0x20] sm:$0xf]
  %v1082 = vld [vmem:[%s1072 + $0x24] sm:$0xf]
  %v1083 = vld [vmem:[%s1072 + $0x28] sm:$0xf]
  %v1084 = vld [vmem:[%s1072 + $0x2c] sm:$0xf]
  %v1085 = vld [vmem:[%s1072 + $0x30] sm:$0xf]
  %v1086 = vld [vmem:[%s1072 + $0x34] sm:$0xf]
  %v1087 = vld [vmem:[%s1072 + $0x38] sm:$0xf]
  %v1088 = vld [vmem:[%s1072 + $0x3c] sm:$0xf]
  %v1095 = vrot.slane %v1070, 4
  %v1096 = vrot.slane %v909, 4
  %v1097 = vsel %vm634, %v1095, %v1096
  %v1098 = vrot.slane %v910, 4
  %v1099 = vsel %vm634, %v1096, %v1098
  %v1100 = vrot.slane %v911, 4
  %v1101 = vsel %vm634, %v1098, %v1100
  %v1102 = vrot.slane %v912, 4
  %v1103 = vsel %vm634, %v1100, %v1102
  %v1104 = vrot.slane %v1071, 4
  %v1105 = vsel %vm634, %v1102, %v1104
  %v1128 = vunpack.c.l.b16 %v1073
  %v1129 = vunpack.c.l.b16 %v1074
  %v1130 = vunpack.c.l.b16 %v1075
  %v1131 = vunpack.c.l.b16 %v1076
  %v1132 = vunpack.c.l.b16 %v1077
  %v1133 = vunpack.c.l.b16 %v1078
  %v1134 = vunpack.c.l.b16 %v1079
  %v1135 = vunpack.c.l.b16 %v1080
  %v1136 = vunpack.c.l.b16 %v1081
  %v1137 = vunpack.c.l.b16 %v1082
  %v1138 = vunpack.c.l.b16 %v1083
  %v1139 = vunpack.c.l.b16 %v1084
  %v1140 = vunpack.c.l.b16 %v1085
  %v1141 = vunpack.c.l.b16 %v1086
  %v1142 = vunpack.c.l.b16 %v1087
  %v1143 = vunpack.c.l.b16 %v1088
  %v1144 = vpack.c.b16 %v1129, %v1128
  %v1145 = vpack.c.b16 %v1131, %v1130
  %v1146 = vpack.c.b16 %v1133, %v1132
  %v1147 = vpack.c.b16 %v1135, %v1134
  %v1148 = vpack.c.b16 %v1137, %v1136
  %v1149 = vpack.c.b16 %v1139, %v1138
  %v1150 = vpack.c.b16 %v1141, %v1140
  %v1151 = vpack.c.b16 %v1143, %v1142
  %1160 = vmatprep.subr.bf16.mxu0 0
  %1161 = vmatpush1.bf16.msra.mxu0 %v1144
  %1162 = vmatprep.subr.bf16.mxu0 0
  %1163 = vmatpush1.bf16.msra.mxu0 %v1145
  %1164 = vmatprep.subr.bf16.mxu0 0
  %1165 = vmatpush1.bf16.msra.mxu0 %v1146
  %1166 = vmatprep.subr.bf16.mxu0 0
  %1167 = vmatpush1.bf16.msra.mxu0 %v1147
  %1168 = vmatprep.subr.bf16.mxu0 0
  %1169 = vmatpush1.bf16.msra.mxu0 %v1148
  %1170 = vmatprep.subr.bf16.mxu0 0
  %1171 = vmatpush1.bf16.msra.mxu0 %v1149
  %1172 = vmatprep.subr.bf16.mxu0 0
  %1173 = vmatpush1.bf16.msra.mxu0 %v1150
  %1174 = vmatprep.subr.bf16.mxu0 0
  %1175 = vmatpush1.bf16.msra.mxu0 %v1151
  %1176 = vmatprep.subr.bf16.mxu0 0
  %1177 = vmatpush1.bf16.msra.mxu0 0
  %1178 = vmatprep.subr.bf16.mxu0 0
  %1179 = vmatpush1.bf16.msra.mxu0 0
  %1180 = vmatprep.subr.bf16.mxu0 0
  %1181 = vmatpush1.bf16.msra.mxu0 0
  %1182 = vmatprep.subr.bf16.mxu0 0
  %1183 = vmatpush1.bf16.msra.mxu0 0
  %1184 = vmatprep.subr.bf16.mxu0 0
  %1185 = vmatpush1.bf16.msra.mxu0 0
  %1186 = vmatprep.subr.bf16.mxu0 0
  %1187 = vmatpush1.bf16.msra.mxu0 0
  %1188 = vmatprep.subr.bf16.mxu0 0
  %1189 = vmatpush1.bf16.msra.mxu0 0
  %1190 = vmatprep.subr.bf16.mxu0 0
  %1191 = vmatpush1.bf16.msra.mxu0 0
  %1192 = vmatprep.mubr.bf16.mxu0 0
  %1193 = vmatmul.mubr.bf16.gmra.mrb[0].mxu0 %v1097
  %v1194 = vpop.f32.mrb[0].mxu0
  %v1195 = vadd.f32 0.0, %v1194
  %v1196 = vpop.f32.mrb[0].mxu0
  %v1197 = vpop.f32.mrb[0].mxu0
  %v1198 = vadd.f32 0.0, %v1197
  %v1199 = vpop.f32.mrb[0].mxu0
  %1200 = vmatprep.mubr.bf16.mxu0 0
  %1201 = vmatmul.mubr.bf16.gmra.mrb[0].mxu0 %v1099
  %v1202 = vpop.f32.mrb[0].mxu0
  %v1203 = vadd.f32 0.0, %v1202
  %v1204 = vpop.f32.mrb[0].mxu0
  %v1205 = vpop.f32.mrb[0].mxu0
  %v1206 = vadd.f32 0.0, %v1205
  %v1207 = vpop.f32.mrb[0].mxu0
  %1208 = vmatprep.mubr.bf16.mxu0 0
  %1209 = vmatmul.mubr.bf16.gmra.mrb[0].mxu0 %v1101
  %v1210 = vpop.f32.mrb[0].mxu0
  %v1211 = vadd.f32 0.0, %v1210
  %v1212 = vpop.f32.mrb[0].mxu0
  %v1213 = vpop.f32.mrb[0].mxu0
  %v1214 = vadd.f32 0.0, %v1213
  %v1215 = vpop.f32.mrb[0].mxu0
  %1216 = vmatprep.mubr.bf16.mxu0 0
  %1217 = vmatmul.mubr.bf16.gmra.mrb[0].mxu0 %v1103
  %v1218 = vpop.f32.mrb[0].mxu0
  %v1219 = vadd.f32 0.0, %v1218
  %v1220 = vpop.f32.mrb[0].mxu0
  %v1221 = vpop.f32.mrb[0].mxu0
  %v1222 = vadd.f32 0.0, %v1221
  %v1223 = vpop.f32.mrb[0].mxu0
  %1224 = vmatprep.mubr.bf16.mxu0 0
  %1225 = vmatmul.mubr.bf16.gmra.mrb[0].mxu0 %v1105
  %v1226 = vpop.f32.mrb[0].mxu0
  %v1227 = vadd.f32 0.0, %v1226
  %v1228 = vpop.f32.mrb[0].mxu0
  %v1229 = vpop.f32.mrb[0].mxu0
  %v1230 = vadd.f32 0.0, %v1229
  %v1231 = vpop.f32.mrb[0].mxu0
  %1232 = vmatprep.mubr.bf16.mxu0 0
  %1233 = vmatmul.mubr.bf16.gmra.mrb[0].mxu0 %v1104
  %v1234 = vpop.f32.mrb[0].mxu0
  %v1235 = vadd.f32 0.0, %v1234
  %v1236 = vpop.f32.mrb[0].mxu0
  %v1237 = vpop.f32.mrb[0].mxu0
  %v1238 = vpop.f32.mrb[0].mxu0
  %1239 = vdwg.mxu0
  %v1240 = vadd.f32 %v1059, %v1195
  %v1241 = vadd.f32 %v1060, %v1198
  %v1242 = vadd.f32 %v1061, %v1203
  %v1243 = vadd.f32 %v1062, %v1206
  %v1244 = vadd.f32 %v1063, %v1211
  %v1245 = vadd.f32 %v1064, %v1214
  %v1246 = vadd.f32 %v1065, %v1219
  %v1247 = vadd.f32 %v1066, %v1222
  %v1248 = vadd.f32 %v1067, %v1227
  %v1249 = vadd.f32 %v1068, %v1230
  %v1250 = vadd.f32 %v1069, %v1235
  %v1251 = vld [vmem:[%s4] sm:$0x1]
  %v1253 = vlaneseq
  %v1254 = vshrl.u32 %v1253, 7
  %v1255 = vsub.s32 0, %v1254
  %v1256 = vrot.slane %v1251, %v1255
  %v1258 = vadd.f32 %v1240, %v1256
  %v1259 = vadd.f32 %v1241, %v1256
  %v1260 = vadd.f32 %v1242, %v1256
  %v1261 = vadd.f32 %v1243, %v1256
  %v1262 = vadd.f32 %v1244, %v1256
  %v1263 = vadd.f32 %v1245, %v1256
  %v1264 = vadd.f32 %v1246, %v1256
  %v1265 = vadd.f32 %v1247, %v1256
  %v1266 = vadd.f32 %v1248, %v1256
  %v1267 = vadd.f32 %v1249, %v1256
  %v1268 = vadd.f32 %v1250, %v1256
  %v1269 = vmax.f32 %v1258, 0.0
  %v1270 = vmax.f32 %v1259, 0.0
  %v1271 = vmax.f32 %v1260, 0.0
  %v1272 = vmax.f32 %v1261, 0.0
  %v1273 = vmax.f32 %v1262, 0.0
  %v1274 = vmax.f32 %v1263, 0.0
  %v1275 = vmax.f32 %v1264, 0.0
  %v1276 = vmax.f32 %v1265, 0.0
  %v1277 = vmax.f32 %v1266, 0.0
  %v1278 = vmax.f32 %v1267, 0.0
  %v1279 = vmax.f32 %v1268, 0.0
  %v1280 = vpack.c.bf16 %v1270, %v1269
  %v1281 = vpack.c.bf16 %v1272, %v1271
  %v1282 = vpack.c.bf16 %v1274, %v1273
  %v1283 = vpack.c.bf16 %v1276, %v1275
  %v1284 = vpack.c.bf16 %v1278, %v1277
  %v1285 = vpack.c.bf16 %v1279, %v1279
  %v1286 = vld [vmem:[%s5] sm:$0xf]
  %v1287 = vld [vmem:[%s5 + $0x4] sm:$0xf]
  %v1288 = vld [vmem:[%s5 + $0x8] sm:$0xf]
  %v1289 = vld [vmem:[%s5 + $0xc] sm:$0xf]
  %v1290 = vld [vmem:[%s5 + $0x10] sm:$0xf]
  %v1291 = vld [vmem:[%s5 + $0x14] sm:$0xf]
  %v1292 = vld [vmem:[%s5 + $0x18] sm:$0xf]
  %v1293 = vld [vmem:[%s5 + $0x1c] sm:$0xf]
  %s1294 = scalar_lea.vmem %s5, 32
  %v1295 = vld [vmem:[%s1294] sm:$0xf]
  %v1296 = vld [vmem:[%s1294 + $0x4] sm:$0xf]
  %v1297 = vld [vmem:[%s1294 + $0x8] sm:$0xf]
  %v1298 = vld [vmem:[%s1294 + $0xc] sm:$0xf]
  %v1299 = vld [vmem:[%s1294 + $0x10] sm:$0xf]
  %v1300 = vld [vmem:[%s1294 + $0x14] sm:$0xf]
  %v1301 = vld [vmem:[%s1294 + $0x18] sm:$0xf]
  %v1302 = vld [vmem:[%s1294 + $0x1c] sm:$0xf]
  %v1304 = vrot.slane %v1280, 4
  %v1313 = vunpack.c.l.b16 %v1295
  %v1314 = vunpack.c.l.b16 %v1296
  %v1315 = vunpack.c.l.b16 %v1297
  %v1316 = vunpack.c.l.b16 %v1298
  %v1317 = vunpack.c.l.b16 %v1299
  %v1318 = vunpack.c.l.b16 %v1300
  %v1319 = vunpack.c.l.b16 %v1301
  %v1320 = vunpack.c.l.b16 %v1302
  %v1321 = vpack.c.b16 %v1314, %v1313
  %v1322 = vpack.c.b16 %v1316, %v1315
  %v1323 = vpack.c.b16 %v1318, %v1317
  %v1324 = vpack.c.b16 %v1320, %v1319
  %vm1329 = vcmask 523264
  %v1331 = vsel %vm1329, %v1304, 0
  %1333 = vmatprep.subr.bf16.mxu0 0
  %1334 = vmatpush1.bf16.msra.mxu0 %v1321
  %1335 = vmatprep.subr.bf16.mxu0 0
  %1336 = vmatpush1.bf16.msra.mxu0 %v1322
  %1337 = vmatprep.subr.bf16.mxu0 0
  %1338 = vmatpush1.bf16.msra.mxu0 %v1323
  %1339 = vmatprep.subr.bf16.mxu0 0
  %1340 = vmatpush1.bf16.msra.mxu0 %v1324
  %1341 = vmatprep.subr.bf16.mxu0 0
  %1342 = vmatpush1.bf16.msra.mxu0 0
  %1343 = vmatprep.subr.bf16.mxu0 0
  %1344 = vmatpush1.bf16.msra.mxu0 0
  %1345 = vmatprep.subr.bf16.mxu0 0
  %1346 = vmatpush1.bf16.msra.mxu0 0
  %1347 = vmatprep.subr.bf16.mxu0 0
  %1348 = vmatpush1.bf16.msra.mxu0 0
  %1349 = vmatprep.subr.bf16.mxu0 0
  %1350 = vmatpush1.bf16.msra.mxu0 0
  %1351 = vmatprep.subr.bf16.mxu0 0
  %1352 = vmatpush1.bf16.msra.mxu0 0
  %1353 = vmatprep.subr.bf16.mxu0 0
  %1354 = vmatpush1.bf16.msra.mxu0 0
  %1355 = vmatprep.subr.bf16.mxu0 0
  %1356 = vmatpush1.bf16.msra.mxu0 0
  %1357 = vmatprep.subr.bf16.mxu0 0
  %1358 = vmatpush1.bf16.msra.mxu0 0
  %1359 = vmatprep.subr.bf16.mxu0 0
  %1360 = vmatpush1.bf16.msra.mxu0 0
  %1361 = vmatprep.subr.bf16.mxu0 0
  %1362 = vmatpush1.bf16.msra.mxu0 0
  %1363 = vmatprep.subr.bf16.mxu0 0
  %1364 = vmatpush1.bf16.msra.mxu0 0
  %1365 = vmatprep.mubr.bf16.mxu0 0
  %1366 = vmatmul.mubr.bf16.gmra.mrb[0].mxu0 %v1331
  %v1367 = vpop.f32.mrb[0].mxu0
  %v1368 = vadd.f32 0.0, %v1367
  %v1369 = vpop.f32.mrb[0].mxu0
  %v1370 = vpop.f32.mrb[0].mxu0
  %v1371 = vpop.f32.mrb[0].mxu0
  %1372 = vdwg.mxu0
  %v1381 = vunpack.c.l.b16 %v1286
  %v1382 = vunpack.c.l.b16 %v1287
  %v1383 = vunpack.c.l.b16 %v1288
  %v1384 = vunpack.c.l.b16 %v1289
  %v1385 = vunpack.c.l.b16 %v1290
  %v1386 = vunpack.c.l.b16 %v1291
  %v1387 = vunpack.c.l.b16 %v1292
  %v1388 = vunpack.c.l.b16 %v1293
  %v1389 = vpack.c.b16 %v1382, %v1381
  %v1390 = vpack.c.b16 %v1384, %v1383
  %v1391 = vpack.c.b16 %v1386, %v1385
  %v1392 = vpack.c.b16 %v1388, %v1387
  %v1398 = vsel %vm1329, %v1280, 0
  %1400 = vmatprep.subr.bf16.mxu0 0
  %1401 = vmatpush1.bf16.msra.mxu0 %v1389
  %1402 = vmatprep.subr.bf16.mxu0 0
  %1403 = vmatpush1.bf16.msra.mxu0 %v1390
  %1404 = vmatprep.subr.bf16.mxu0 0
  %1405 = vmatpush1.bf16.msra.mxu0 %v1391
  %1406 = vmatprep.subr.bf16.mxu0 0
  %1407 = vmatpush1.bf16.msra.mxu0 %v1392
  %1408 = vmatprep.subr.bf16.mxu0 0
  %1409 = vmatpush1.bf16.msra.mxu0 0
  %1410 = vmatprep.subr.bf16.mxu0 0
  %1411 = vmatpush1.bf16.msra.mxu0 0
  %1412 = vmatprep.subr.bf16.mxu0 0
  %1413 = vmatpush1.bf16.msra.mxu0 0
  %1414 = vmatprep.subr.bf16.mxu0 0
  %1415 = vmatpush1.bf16.msra.mxu0 0
  %1416 = vmatprep.subr.bf16.mxu0 0
  %1417 = vmatpush1.bf16.msra.mxu0 0
  %1418 = vmatprep.subr.bf16.mxu0 0
  %1419 = vmatpush1.bf16.msra.mxu0 0
  %1420 = vmatprep.subr.bf16.mxu0 0
  %1421 = vmatpush1.bf16.msra.mxu0 0
  %1422 = vmatprep.subr.bf16.mxu0 0
  %1423 = vmatpush1.bf16.msra.mxu0 0
  %1424 = vmatprep.subr.bf16.mxu0 0
  %1425 = vmatpush1.bf16.msra.mxu0 0
  %1426 = vmatprep.subr.bf16.mxu0 0
  %1427 = vmatpush1.bf16.msra.mxu0 0
  %1428 = vmatprep.subr.bf16.mxu0 0
  %1429 = vmatpush1.bf16.msra.mxu0 0
  %1430 = vmatprep.subr.bf16.mxu0 0
  %1431 = vmatpush1.bf16.msra.mxu0 0
  %1432 = vmatprep.mubr.bf16.mxu0 0
  %1433 = vmatmul.mubr.bf16.gmra.mrb[0].mxu0 %v1398
  %v1434 = vpop.f32.mrb[0].mxu0
  %v1435 = vadd.f32 %v1368, %v1434
  %v1436 = vpop.f32.mrb[0].mxu0
  %v1437 = vpop.f32.mrb[0].mxu0
  %v1438 = vpop.f32.mrb[0].mxu0
  %1439 = vdwg.mxu0
  %s1440 = scalar_lea.vmem %s5, 64
  %v1441 = vld [vmem:[%s1440] sm:$0xf]
  %v1442 = vld [vmem:[%s1440 + $0x4] sm:$0xf]
  %v1443 = vld [vmem:[%s1440 + $0x8] sm:$0xf]
  %v1444 = vld [vmem:[%s1440 + $0xc] sm:$0xf]
  %v1445 = vld [vmem:[%s1440 + $0x10] sm:$0xf]
  %v1446 = vld [vmem:[%s1440 + $0x14] sm:$0xf]
  %v1447 = vld [vmem:[%s1440 + $0x18] sm:$0xf]
  %v1448 = vld [vmem:[%s1440 + $0x1c] sm:$0xf]
  %v1457 = vunpack.c.l.b16 %v1441
  %v1458 = vunpack.c.l.b16 %v1442
  %v1459 = vunpack.c.l.b16 %v1443
  %v1460 = vunpack.c.l.b16 %v1444
  %v1461 = vunpack.c.l.b16 %v1445
  %v1462 = vunpack.c.l.b16 %v1446
  %v1463 = vunpack.c.l.b16 %v1447
  %v1464 = vunpack.c.l.b16 %v1448
  %v1465 = vpack.c.b16 %v1458, %v1457
  %v1466 = vpack.c.b16 %v1460, %v1459
  %v1467 = vpack.c.b16 %v1462, %v1461
  %v1468 = vpack.c.b16 %v1464, %v1463
  %v1474 = vsel %vm1329, %v1281, 0
  %1476 = vmatprep.subr.bf16.mxu0 0
  %1477 = vmatpush1.bf16.msra.mxu0 %v1465
  %1478 = vmatprep.subr.bf16.mxu0 0
  %1479 = vmatpush1.bf16.msra.mxu0 %v1466
  %1480 = vmatprep.subr.bf16.mxu0 0
  %1481 = vmatpush1.bf16.msra.mxu0 %v1467
  %1482 = vmatprep.subr.bf16.mxu0 0
  %1483 = vmatpush1.bf16.msra.mxu0 %v1468
  %1484 = vmatprep.subr.bf16.mxu0 0
  %1485 = vmatpush1.bf16.msra.mxu0 0
  %1486 = vmatprep.subr.bf16.mxu0 0
  %1487 = vmatpush1.bf16.msra.mxu0 0
  %1488 = vmatprep.subr.bf16.mxu0 0
  %1489 = vmatpush1.bf16.msra.mxu0 0
  %1490 = vmatprep.subr.bf16.mxu0 0
  %1491 = vmatpush1.bf16.msra.mxu0 0
  %1492 = vmatprep.subr.bf16.mxu0 0
  %1493 = vmatpush1.bf16.msra.mxu0 0
  %1494 = vmatprep.subr.bf16.mxu0 0
  %1495 = vmatpush1.bf16.msra.mxu0 0
  %1496 = vmatprep.subr.bf16.mxu0 0
  %1497 = vmatpush1.bf16.msra.mxu0 0
  %1498 = vmatprep.subr.bf16.mxu0 0
  %1499 = vmatpush1.bf16.msra.mxu0 0
  %1500 = vmatprep.subr.bf16.mxu0 0
  %1501 = vmatpush1.bf16.msra.mxu0 0
  %1502 = vmatprep.subr.bf16.mxu0 0
  %1503 = vmatpush1.bf16.msra.mxu0 0
  %1504 = vmatprep.subr.bf16.mxu0 0
  %1505 = vmatpush1.bf16.msra.mxu0 0
  %1506 = vmatprep.subr.bf16.mxu0 0
  %1507 = vmatpush1.bf16.msra.mxu0 0
  %1508 = vmatprep.mubr.bf16.mxu0 0
  %1509 = vmatmul.mubr.bf16.gmra.mrb[0].mxu0 %v1474
  %v1510 = vpop.f32.mrb[0].mxu0
  %v1511 = vadd.f32 0.0, %v1510
  %v1512 = vpop.f32.mrb[0].mxu0
  %v1513 = vpop.f32.mrb[0].mxu0
  %v1514 = vpop.f32.mrb[0].mxu0
  %1515 = vdwg.mxu0
  %v1516 = vadd.f32 %v1435, %v1511
  %s1517 = scalar_lea.vmem %s5, 96
  %v1518 = vld [vmem:[%s1517] sm:$0xf]
  %v1519 = vld [vmem:[%s1517 + $0x4] sm:$0xf]
  %v1520 = vld [vmem:[%s1517 + $0x8] sm:$0xf]
  %v1521 = vld [vmem:[%s1517 + $0xc] sm:$0xf]
  %v1522 = vld [vmem:[%s1517 + $0x10] sm:$0xf]
  %v1523 = vld [vmem:[%s1517 + $0x14] sm:$0xf]
  %v1524 = vld [vmem:[%s1517 + $0x18] sm:$0xf]
  %v1525 = vld [vmem:[%s1517 + $0x1c] sm:$0xf]
  %v1534 = vunpack.c.l.b16 %v1518
  %v1535 = vunpack.c.l.b16 %v1519
  %v1536 = vunpack.c.l.b16 %v1520
  %v1537 = vunpack.c.l.b16 %v1521
  %v1538 = vunpack.c.l.b16 %v1522
  %v1539 = vunpack.c.l.b16 %v1523
  %v1540 = vunpack.c.l.b16 %v1524
  %v1541 = vunpack.c.l.b16 %v1525
  %v1542 = vpack.c.b16 %v1535, %v1534
  %v1543 = vpack.c.b16 %v1537, %v1536
  %v1544 = vpack.c.b16 %v1539, %v1538
  %v1545 = vpack.c.b16 %v1541, %v1540
  %v1551 = vsel %vm1329, %v1282, 0
  %1553 = vmatprep.subr.bf16.mxu0 0
  %1554 = vmatpush1.bf16.msra.mxu0 %v1542
  %1555 = vmatprep.subr.bf16.mxu0 0
  %1556 = vmatpush1.bf16.msra.mxu0 %v1543
  %1557 = vmatprep.subr.bf16.mxu0 0
  %1558 = vmatpush1.bf16.msra.mxu0 %v1544
  %1559 = vmatprep.subr.bf16.mxu0 0
  %1560 = vmatpush1.bf16.msra.mxu0 %v1545
  %1561 = vmatprep.subr.bf16.mxu0 0
  %1562 = vmatpush1.bf16.msra.mxu0 0
  %1563 = vmatprep.subr.bf16.mxu0 0
  %1564 = vmatpush1.bf16.msra.mxu0 0
  %1565 = vmatprep.subr.bf16.mxu0 0
  %1566 = vmatpush1.bf16.msra.mxu0 0
  %1567 = vmatprep.subr.bf16.mxu0 0
  %1568 = vmatpush1.bf16.msra.mxu0 0
  %1569 = vmatprep.subr.bf16.mxu0 0
  %1570 = vmatpush1.bf16.msra.mxu0 0
  %1571 = vmatprep.subr.bf16.mxu0 0
  %1572 = vmatpush1.bf16.msra.mxu0 0
  %1573 = vmatprep.subr.bf16.mxu0 0
  %1574 = vmatpush1.bf16.msra.mxu0 0
  %1575 = vmatprep.subr.bf16.mxu0 0
  %1576 = vmatpush1.bf16.msra.mxu0 0
  %1577 = vmatprep.subr.bf16.mxu0 0
  %1578 = vmatpush1.bf16.msra.mxu0 0
  %1579 = vmatprep.subr.bf16.mxu0 0
  %1580 = vmatpush1.bf16.msra.mxu0 0
  %1581 = vmatprep.subr.bf16.mxu0 0
  %1582 = vmatpush1.bf16.msra.mxu0 0
  %1583 = vmatprep.subr.bf16.mxu0 0
  %1584 = vmatpush1.bf16.msra.mxu0 0
  %1585 = vmatprep.mubr.bf16.mxu0 0
  %1586 = vmatmul.mubr.bf16.gmra.mrb[0].mxu0 %v1551
  %v1587 = vpop.f32.mrb[0].mxu0
  %v1588 = vadd.f32 0.0, %v1587
  %v1589 = vpop.f32.mrb[0].mxu0
  %v1590 = vpop.f32.mrb[0].mxu0
  %v1591 = vpop.f32.mrb[0].mxu0
  %1592 = vdwg.mxu0
  %v1593 = vadd.f32 %v1516, %v1588
  %s1594 = scalar_lea.vmem %s5, 128
  %v1595 = vld [vmem:[%s1594] sm:$0xf]
  %v1596 = vld [vmem:[%s1594 + $0x4] sm:$0xf]
  %v1597 = vld [vmem:[%s1594 + $0x8] sm:$0xf]
  %v1598 = vld [vmem:[%s1594 + $0xc] sm:$0xf]
  %v1599 = vld [vmem:[%s1594 + $0x10] sm:$0xf]
  %v1600 = vld [vmem:[%s1594 + $0x14] sm:$0xf]
  %v1601 = vld [vmem:[%s1594 + $0x18] sm:$0xf]
  %v1602 = vld [vmem:[%s1594 + $0x1c] sm:$0xf]
  %v1604 = vrot.slane %v1282, 4
  %v1613 = vunpack.c.l.b16 %v1595
  %v1614 = vunpack.c.l.b16 %v1596
  %v1615 = vunpack.c.l.b16 %v1597
  %v1616 = vunpack.c.l.b16 %v1598
  %v1617 = vunpack.c.l.b16 %v1599
  %v1618 = vunpack.c.l.b16 %v1600
  %v1619 = vunpack.c.l.b16 %v1601
  %v1620 = vunpack.c.l.b16 %v1602
  %v1621 = vpack.c.b16 %v1614, %v1613
  %v1622 = vpack.c.b16 %v1616, %v1615
  %v1623 = vpack.c.b16 %v1618, %v1617
  %v1624 = vpack.c.b16 %v1620, %v1619
  %v1630 = vsel %vm1329, %v1604, 0
  %1632 = vmatprep.subr.bf16.mxu0 0
  %1633 = vmatpush1.bf16.msra.mxu0 %v1621
  %1634 = vmatprep.subr.bf16.mxu0 0
  %1635 = vmatpush1.bf16.msra.mxu0 %v1622
  %1636 = vmatprep.subr.bf16.mxu0 0
  %1637 = vmatpush1.bf16.msra.mxu0 %v1623
  %1638 = vmatprep.subr.bf16.mxu0 0
  %1639 = vmatpush1.bf16.msra.mxu0 %v1624
  %1640 = vmatprep.subr.bf16.mxu0 0
  %1641 = vmatpush1.bf16.msra.mxu0 0
  %1642 = vmatprep.subr.bf16.mxu0 0
  %1643 = vmatpush1.bf16.msra.mxu0 0
  %1644 = vmatprep.subr.bf16.mxu0 0
  %1645 = vmatpush1.bf16.msra.mxu0 0
  %1646 = vmatprep.subr.bf16.mxu0 0
  %1647 = vmatpush1.bf16.msra.mxu0 0
  %1648 = vmatprep.subr.bf16.mxu0 0
  %1649 = vmatpush1.bf16.msra.mxu0 0
  %1650 = vmatprep.subr.bf16.mxu0 0
  %1651 = vmatpush1.bf16.msra.mxu0 0
  %1652 = vmatprep.subr.bf16.mxu0 0
  %1653 = vmatpush1.bf16.msra.mxu0 0
  %1654 = vmatprep.subr.bf16.mxu0 0
  %1655 = vmatpush1.bf16.msra.mxu0 0
  %1656 = vmatprep.subr.bf16.mxu0 0
  %1657 = vmatpush1.bf16.msra.mxu0 0
  %1658 = vmatprep.subr.bf16.mxu0 0
  %1659 = vmatpush1.bf16.msra.mxu0 0
  %1660 = vmatprep.subr.bf16.mxu0 0
  %1661 = vmatpush1.bf16.msra.mxu0 0
  %1662 = vmatprep.subr.bf16.mxu0 0
  %1663 = vmatpush1.bf16.msra.mxu0 0
  %1664 = vmatprep.mubr.bf16.mxu0 0
  %1665 = vmatmul.mubr.bf16.gmra.mrb[0].mxu0 %v1630
  %v1666 = vpop.f32.mrb[0].mxu0
  %v1667 = vadd.f32 0.0, %v1666
  %v1668 = vpop.f32.mrb[0].mxu0
  %v1669 = vpop.f32.mrb[0].mxu0
  %v1670 = vpop.f32.mrb[0].mxu0
  %1671 = vdwg.mxu0
  %v1672 = vadd.f32 %v1593, %v1667
  %s1673 = scalar_lea.vmem %s5, 160
  %v1674 = vld [vmem:[%s1673] sm:$0xf]
  %v1675 = vld [vmem:[%s1673 + $0x4] sm:$0xf]
  %v1676 = vld [vmem:[%s1673 + $0x8] sm:$0xf]
  %v1677 = vld [vmem:[%s1673 + $0xc] sm:$0xf]
  %v1678 = vld [vmem:[%s1673 + $0x10] sm:$0xf]
  %v1679 = vld [vmem:[%s1673 + $0x14] sm:$0xf]
  %v1680 = vld [vmem:[%s1673 + $0x18] sm:$0xf]
  %v1681 = vld [vmem:[%s1673 + $0x1c] sm:$0xf]
  %v1690 = vunpack.c.l.b16 %v1674
  %v1691 = vunpack.c.l.b16 %v1675
  %v1692 = vunpack.c.l.b16 %v1676
  %v1693 = vunpack.c.l.b16 %v1677
  %v1694 = vunpack.c.l.b16 %v1678
  %v1695 = vunpack.c.l.b16 %v1679
  %v1696 = vunpack.c.l.b16 %v1680
  %v1697 = vunpack.c.l.b16 %v1681
  %v1698 = vpack.c.b16 %v1691, %v1690
  %v1699 = vpack.c.b16 %v1693, %v1692
  %v1700 = vpack.c.b16 %v1695, %v1694
  %v1701 = vpack.c.b16 %v1697, %v1696
  %v1707 = vsel %vm1329, %v1283, 0
  %1709 = vmatprep.subr.bf16.mxu0 0
  %1710 = vmatpush1.bf16.msra.mxu0 %v1698
  %1711 = vmatprep.subr.bf16.mxu0 0
  %1712 = vmatpush1.bf16.msra.mxu0 %v1699
  %1713 = vmatprep.subr.bf16.mxu0 0
  %1714 = vmatpush1.bf16.msra.mxu0 %v1700
  %1715 = vmatprep.subr.bf16.mxu0 0
  %1716 = vmatpush1.bf16.msra.mxu0 %v1701
  %1717 = vmatprep.subr.bf16.mxu0 0
  %1718 = vmatpush1.bf16.msra.mxu0 0
  %1719 = vmatprep.subr.bf16.mxu0 0
  %1720 = vmatpush1.bf16.msra.mxu0 0
  %1721 = vmatprep.subr.bf16.mxu0 0
  %1722 = vmatpush1.bf16.msra.mxu0 0
  %1723 = vmatprep.subr.bf16.mxu0 0
  %1724 = vmatpush1.bf16.msra.mxu0 0
  %1725 = vmatprep.subr.bf16.mxu0 0
  %1726 = vmatpush1.bf16.msra.mxu0 0
  %1727 = vmatprep.subr.bf16.mxu0 0
  %1728 = vmatpush1.bf16.msra.mxu0 0
  %1729 = vmatprep.subr.bf16.mxu0 0
  %1730 = vmatpush1.bf16.msra.mxu0 0
  %1731 = vmatprep.subr.bf16.mxu0 0
  %1732 = vmatpush1.bf16.msra.mxu0 0
  %1733 = vmatprep.subr.bf16.mxu0 0
  %1734 = vmatpush1.bf16.msra.mxu0 0
  %1735 = vmatprep.subr.bf16.mxu0 0
  %1736 = vmatpush1.bf16.msra.mxu0 0
  %1737 = vmatprep.subr.bf16.mxu0 0
  %1738 = vmatpush1.bf16.msra.mxu0 0
  %1739 = vmatprep.subr.bf16.mxu0 0
  %1740 = vmatpush1.bf16.msra.mxu0 0
  %1741 = vmatprep.mubr.bf16.mxu0 0
  %1742 = vmatmul.mubr.bf16.gmra.mrb[0].mxu0 %v1707
  %v1743 = vpop.f32.mrb[0].mxu0
  %v1744 = vadd.f32 0.0, %v1743
  %v1745 = vpop.f32.mrb[0].mxu0
  %v1746 = vpop.f32.mrb[0].mxu0
  %v1747 = vpop.f32.mrb[0].mxu0
  %1748 = vdwg.mxu0
  %v1749 = vadd.f32 %v1672, %v1744
  %s1750 = scalar_lea.vmem %s5, 192
  %v1751 = vld [vmem:[%s1750] sm:$0xf]
  %v1752 = vld [vmem:[%s1750 + $0x4] sm:$0xf]
  %v1753 = vld [vmem:[%s1750 + $0x8] sm:$0xf]
  %v1754 = vld [vmem:[%s1750 + $0xc] sm:$0xf]
  %v1755 = vld [vmem:[%s1750 + $0x10] sm:$0xf]
  %v1756 = vld [vmem:[%s1750 + $0x14] sm:$0xf]
  %v1757 = vld [vmem:[%s1750 + $0x18] sm:$0xf]
  %v1758 = vld [vmem:[%s1750 + $0x1c] sm:$0xf]
  %v1767 = vunpack.c.l.b16 %v1751
  %v1768 = vunpack.c.l.b16 %v1752
  %v1769 = vunpack.c.l.b16 %v1753
  %v1770 = vunpack.c.l.b16 %v1754
  %v1771 = vunpack.c.l.b16 %v1755
  %v1772 = vunpack.c.l.b16 %v1756
  %v1773 = vunpack.c.l.b16 %v1757
  %v1774 = vunpack.c.l.b16 %v1758
  %v1775 = vpack.c.b16 %v1768, %v1767
  %v1776 = vpack.c.b16 %v1770, %v1769
  %v1777 = vpack.c.b16 %v1772, %v1771
  %v1778 = vpack.c.b16 %v1774, %v1773
  %v1784 = vsel %vm1329, %v1284, 0
  %1786 = vmatprep.subr.bf16.mxu0 0
  %1787 = vmatpush1.bf16.msra.mxu0 %v1775
  %1788 = vmatprep.subr.bf16.mxu0 0
  %1789 = vmatpush1.bf16.msra.mxu0 %v1776
  %1790 = vmatprep.subr.bf16.mxu0 0
  %1791 = vmatpush1.bf16.msra.mxu0 %v1777
  %1792 = vmatprep.subr.bf16.mxu0 0
  %1793 = vmatpush1.bf16.msra.mxu0 %v1778
  %1794 = vmatprep.subr.bf16.mxu0 0
  %1795 = vmatpush1.bf16.msra.mxu0 0
  %1796 = vmatprep.subr.bf16.mxu0 0
  %1797 = vmatpush1.bf16.msra.mxu0 0
  %1798 = vmatprep.subr.bf16.mxu0 0
  %1799 = vmatpush1.bf16.msra.mxu0 0
  %1800 = vmatprep.subr.bf16.mxu0 0
  %1801 = vmatpush1.bf16.msra.mxu0 0
  %1802 = vmatprep.subr.bf16.mxu0 0
  %1803 = vmatpush1.bf16.msra.mxu0 0
  %1804 = vmatprep.subr.bf16.mxu0 0
  %1805 = vmatpush1.bf16.msra.mxu0 0
  %1806 = vmatprep.subr.bf16.mxu0 0
  %1807 = vmatpush1.bf16.msra.mxu0 0
  %1808 = vmatprep.subr.bf16.mxu0 0
  %1809 = vmatpush1.bf16.msra.mxu0 0
  %1810 = vmatprep.subr.bf16.mxu0 0
  %1811 = vmatpush1.bf16.msra.mxu0 0
  %1812 = vmatprep.subr.bf16.mxu0 0
  %1813 = vmatpush1.bf16.msra.mxu0 0
  %1814 = vmatprep.subr.bf16.mxu0 0
  %1815 = vmatpush1.bf16.msra.mxu0 0
  %1816 = vmatprep.subr.bf16.mxu0 0
  %1817 = vmatpush1.bf16.msra.mxu0 0
  %1818 = vmatprep.mubr.bf16.mxu0 0
  %1819 = vmatmul.mubr.bf16.gmra.mrb[0].mxu0 %v1784
  %v1820 = vpop.f32.mrb[0].mxu0
  %v1821 = vadd.f32 0.0, %v1820
  %v1822 = vpop.f32.mrb[0].mxu0
  %v1823 = vpop.f32.mrb[0].mxu0
  %v1824 = vpop.f32.mrb[0].mxu0
  %1825 = vdwg.mxu0
  %v1826 = vadd.f32 %v1749, %v1821
  %s1827 = scalar_lea.vmem %s5, 224
  %v1828 = vld [vmem:[%s1827] sm:$0xf]
  %v1829 = vld [vmem:[%s1827 + $0x4] sm:$0xf]
  %v1830 = vld [vmem:[%s1827 + $0x8] sm:$0xf]
  %v1831 = vld [vmem:[%s1827 + $0xc] sm:$0xf]
  %v1832 = vld [vmem:[%s1827 + $0x10] sm:$0xf]
  %v1833 = vld [vmem:[%s1827 + $0x14] sm:$0xf]
  %v1834 = vld [vmem:[%s1827 + $0x18] sm:$0xf]
  %v1835 = vld [vmem:[%s1827 + $0x1c] sm:$0xf]
  %v1837 = vrot.slane %v1284, 4
  %v1846 = vunpack.c.l.b16 %v1828
  %v1847 = vunpack.c.l.b16 %v1829
  %v1848 = vunpack.c.l.b16 %v1830
  %v1849 = vunpack.c.l.b16 %v1831
  %v1850 = vunpack.c.l.b16 %v1832
  %v1851 = vunpack.c.l.b16 %v1833
  %v1852 = vunpack.c.l.b16 %v1834
  %v1853 = vunpack.c.l.b16 %v1835
  %v1854 = vpack.c.b16 %v1847, %v1846
  %v1855 = vpack.c.b16 %v1849, %v1848
  %v1856 = vpack.c.b16 %v1851, %v1850
  %v1857 = vpack.c.b16 %v1853, %v1852
  %v1863 = vsel %vm1329, %v1837, 0
  %1865 = vmatprep.subr.bf16.mxu0 0
  %1866 = vmatpush1.bf16.msra.mxu0 %v1854
  %1867 = vmatprep.subr.bf16.mxu0 0
  %1868 = vmatpush1.bf16.msra.mxu0 %v1855
  %1869 = vmatprep.subr.bf16.mxu0 0
  %1870 = vmatpush1.bf16.msra.mxu0 %v1856
  %1871 = vmatprep.subr.bf16.mxu0 0
  %1872 = vmatpush1.bf16.msra.mxu0 %v1857
  %1873 = vmatprep.subr.bf16.mxu0 0
  %1874 = vmatpush1.bf16.msra.mxu0 0
  %1875 = vmatprep.subr.bf16.mxu0 0
  %1876 = vmatpush1.bf16.msra.mxu0 0
  %1877 = vmatprep.subr.bf16.mxu0 0
  %1878 = vmatpush1.bf16.msra.mxu0 0
  %1879 = vmatprep.subr.bf16.mxu0 0
  %1880 = vmatpush1.bf16.msra.mxu0 0
  %1881 = vmatprep.subr.bf16.mxu0 0
  %1882 = vmatpush1.bf16.msra.mxu0 0
  %1883 = vmatprep.subr.bf16.mxu0 0
  %1884 = vmatpush1.bf16.msra.mxu0 0
  %1885 = vmatprep.subr.bf16.mxu0 0
  %1886 = vmatpush1.bf16.msra.mxu0 0
  %1887 = vmatprep.subr.bf16.mxu0 0
  %1888 = vmatpush1.bf16.msra.mxu0 0
  %1889 = vmatprep.subr.bf16.mxu0 0
  %1890 = vmatpush1.bf16.msra.mxu0 0
  %1891 = vmatprep.subr.bf16.mxu0 0
  %1892 = vmatpush1.bf16.msra.mxu0 0
  %1893 = vmatprep.subr.bf16.mxu0 0
  %1894 = vmatpush1.bf16.msra.mxu0 0
  %1895 = vmatprep.subr.bf16.mxu0 0
  %1896 = vmatpush1.bf16.msra.mxu0 0
  %1897 = vmatprep.mubr.bf16.mxu0 0
  %1898 = vmatmul.mubr.bf16.gmra.mrb[0].mxu0 %v1863
  %v1899 = vpop.f32.mrb[0].mxu0
  %v1900 = vadd.f32 0.0, %v1899
  %v1901 = vpop.f32.mrb[0].mxu0
  %v1902 = vpop.f32.mrb[0].mxu0
  %v1903 = vpop.f32.mrb[0].mxu0
  %1904 = vdwg.mxu0
  %v1905 = vadd.f32 %v1826, %v1900
  %s1906 = scalar_lea.vmem %s5, 256
  %v1907 = vld [vmem:[%s1906] sm:$0xf]
  %v1908 = vld [vmem:[%s1906 + $0x4] sm:$0xf]
  %v1909 = vld [vmem:[%s1906 + $0x8] sm:$0xf]
  %v1910 = vld [vmem:[%s1906 + $0xc] sm:$0xf]
  %v1911 = vld [vmem:[%s1906 + $0x10] sm:$0xf]
  %v1912 = vld [vmem:[%s1906 + $0x14] sm:$0xf]
  %v1913 = vld [vmem:[%s1906 + $0x18] sm:$0xf]
  %v1914 = vld [vmem:[%s1906 + $0x1c] sm:$0xf]
  %v1923 = vunpack.c.l.b16 %v1907
  %v1924 = vunpack.c.l.b16 %v1908
  %v1925 = vunpack.c.l.b16 %v1909
  %v1926 = vunpack.c.l.b16 %v1910
  %v1927 = vunpack.c.l.b16 %v1911
  %v1928 = vunpack.c.l.b16 %v1912
  %v1929 = vunpack.c.l.b16 %v1913
  %v1930 = vunpack.c.l.b16 %v1914
  %v1931 = vpack.c.b16 %v1924, %v1923
  %v1932 = vpack.c.b16 %v1926, %v1925
  %v1933 = vpack.c.b16 %v1928, %v1927
  %v1934 = vpack.c.b16 %v1930, %v1929
  %v1940 = vsel %vm1329, %v1285, 0
  %1942 = vmatprep.subr.bf16.mxu0 0
  %1943 = vmatpush1.bf16.msra.mxu0 %v1931
  %1944 = vmatprep.subr.bf16.mxu0 0
  %1945 = vmatpush1.bf16.msra.mxu0 %v1932
  %1946 = vmatprep.subr.bf16.mxu0 0
  %1947 = vmatpush1.bf16.msra.mxu0 %v1933
  %1948 = vmatprep.subr.bf16.mxu0 0
  %1949 = vmatpush1.bf16.msra.mxu0 %v1934
  %1950 = vmatprep.subr.bf16.mxu0 0
  %1951 = vmatpush1.bf16.msra.mxu0 0
  %1952 = vmatprep.subr.bf16.mxu0 0
  %1953 = vmatpush1.bf16.msra.mxu0 0
  %1954 = vmatprep.subr.bf16.mxu0 0
  %1955 = vmatpush1.bf16.msra.mxu0 0
  %1956 = vmatprep.subr.bf16.mxu0 0
  %1957 = vmatpush1.bf16.msra.mxu0 0
  %1958 = vmatprep.subr.bf16.mxu0 0
  %1959 = vmatpush1.bf16.msra.mxu0 0
  %1960 = vmatprep.subr.bf16.mxu0 0
  %1961 = vmatpush1.bf16.msra.mxu0 0
  %1962 = vmatprep.subr.bf16.mxu0 0
  %1963 = vmatpush1.bf16.msra.mxu0 0
  %1964 = vmatprep.subr.bf16.mxu0 0
  %1965 = vmatpush1.bf16.msra.mxu0 0
  %1966 = vmatprep.subr.bf16.mxu0 0
  %1967 = vmatpush1.bf16.msra.mxu0 0
  %1968 = vmatprep.subr.bf16.mxu0 0
  %1969 = vmatpush1.bf16.msra.mxu0 0
  %1970 = vmatprep.subr.bf16.mxu0 0
  %1971 = vmatpush1.bf16.msra.mxu0 0
  %1972 = vmatprep.subr.bf16.mxu0 0
  %1973 = vmatpush1.bf16.msra.mxu0 0
  %1974 = vmatprep.mubr.bf16.mxu0 0
  %1975 = vmatmul.mubr.bf16.gmra.mrb[0].mxu0 %v1940
  %v1976 = vpop.f32.mrb[0].mxu0
  %v1977 = vadd.f32 0.0, %v1976
  %v1978 = vpop.f32.mrb[0].mxu0
  %v1979 = vpop.f32.mrb[0].mxu0
  %v1980 = vpop.f32.mrb[0].mxu0
  %1981 = vdwg.mxu0
  %v1982 = vadd.f32 %v1905, %v1977
  %v1983 = vld [vmem:[%s6] sm:$0x1]
  %v1985 = vlaneseq
  %v1986 = vshrl.u32 %v1985, 7
  %v1987 = vsub.s32 0, %v1986
  %v1988 = vrot.slane %v1983, %v1987
  %v1990 = vadd.f32 %v1982, %v1988
  %v1991 = vmax.f32 %v1990, 0.0
  %v1992 = vpack.c.bf16 %v1991, %v1991
  %v1993 = vld [vmem:[%s7] sm:$0xf]
  %v1994 = vld [vmem:[%s7 + $0x4] sm:$0xf]
  %v1995 = vld [vmem:[%s7 + $0x8] sm:$0xf]
  %v1996 = vld [vmem:[%s7 + $0xc] sm:$0xf]
  %v1997 = vld [vmem:[%s7 + $0x10] sm:$0xf]
  %v1998 = vld [vmem:[%s7 + $0x14] sm:$0xf]
  %v1999 = vld [vmem:[%s7 + $0x18] sm:$0xf]
  %v2000 = vld [vmem:[%s7 + $0x1c] sm:$0xf]
  %v2001 = vld [vmem:[%s7 + $0x20] sm:$0xf]
  %v2002 = vld [vmem:[%s7 + $0x24] sm:$0xf]
  %v2003 = vld [vmem:[%s7 + $0x28] sm:$0xf]
  %v2004 = vld [vmem:[%s7 + $0x2c] sm:$0xf]
  %v2005 = vld [vmem:[%s7 + $0x30] sm:$0xf]
  %v2006 = vld [vmem:[%s7 + $0x34] sm:$0xf]
  %v2007 = vld [vmem:[%s7 + $0x38] sm:$0xf]
  %v2008 = vld [vmem:[%s7 + $0x3c] sm:$0xf]
  %v2009 = vld [vmem:[%s8] sm:$0x1]
  %v2011 = vlaneseq
  %v2012 = vshrl.u32 %v2011, 7
  %v2013 = vsub.s32 0, %v2012
  %v2014 = vrot.slane %v2009, %v2013
  %v2032 = vunpack.c.l.b16 %v1993
  %v2033 = vunpack.c.l.b16 %v1994
  %v2034 = vunpack.c.l.b16 %v1995
  %v2035 = vunpack.c.l.b16 %v1996
  %v2036 = vunpack.c.l.b16 %v1997
  %v2037 = vunpack.c.l.b16 %v1998
  %v2038 = vunpack.c.l.b16 %v1999
  %v2039 = vunpack.c.l.b16 %v2000
  %v2040 = vunpack.c.l.b16 %v2001
  %v2041 = vunpack.c.l.b16 %v2002
  %v2042 = vunpack.c.l.b16 %v2003
  %v2043 = vunpack.c.l.b16 %v2004
  %v2044 = vunpack.c.l.b16 %v2005
  %v2045 = vunpack.c.l.b16 %v2006
  %v2046 = vunpack.c.l.b16 %v2007
  %v2047 = vunpack.c.l.b16 %v2008
  %v2048 = vpack.c.b16 %v2033, %v2032
  %v2049 = vpack.c.b16 %v2035, %v2034
  %v2050 = vpack.c.b16 %v2037, %v2036
  %v2051 = vpack.c.b16 %v2039, %v2038
  %v2052 = vpack.c.b16 %v2041, %v2040
  %v2053 = vpack.c.b16 %v2043, %v2042
  %v2054 = vpack.c.b16 %v2045, %v2044
  %v2055 = vpack.c.b16 %v2047, %v2046
  %2064 = vmatprep.subr.bf16.mxu0 0
  %2065 = vmatpush1.bf16.msra.mxu0 %v2048
  %2066 = vmatprep.subr.bf16.mxu0 0
  %2067 = vmatpush1.bf16.msra.mxu0 %v2049
  %2068 = vmatprep.subr.bf16.mxu0 0
  %2069 = vmatpush1.bf16.msra.mxu0 %v2050
  %2070 = vmatprep.subr.bf16.mxu0 0
  %2071 = vmatpush1.bf16.msra.mxu0 %v2051
  %2072 = vmatprep.subr.bf16.mxu0 0
  %2073 = vmatpush1.bf16.msra.mxu0 %v2052
  %2074 = vmatprep.subr.bf16.mxu0 0
  %2075 = vmatpush1.bf16.msra.mxu0 %v2053
  %2076 = vmatprep.subr.bf16.mxu0 0
  %2077 = vmatpush1.bf16.msra.mxu0 %v2054
  %2078 = vmatprep.subr.bf16.mxu0 0
  %2079 = vmatpush1.bf16.msra.mxu0 %v2055
  %2080 = vmatprep.subr.bf16.mxu0 0
  %2081 = vmatpush1.bf16.msra.mxu0 0
  %2082 = vmatprep.subr.bf16.mxu0 0
  %2083 = vmatpush1.bf16.msra.mxu0 0
  %2084 = vmatprep.subr.bf16.mxu0 0
  %2085 = vmatpush1.bf16.msra.mxu0 0
  %2086 = vmatprep.subr.bf16.mxu0 0
  %2087 = vmatpush1.bf16.msra.mxu0 0
  %2088 = vmatprep.subr.bf16.mxu0 0
  %2089 = vmatpush1.bf16.msra.mxu0 0
  %2090 = vmatprep.subr.bf16.mxu0 0
  %2091 = vmatpush1.bf16.msra.mxu0 0
  %2092 = vmatprep.subr.bf16.mxu0 0
  %2093 = vmatpush1.bf16.msra.mxu0 0
  %2094 = vmatprep.subr.bf16.mxu0 0
  %2095 = vmatpush1.bf16.msra.mxu0 0
  %2096 = vmatprep.mubr.bf16.mxu0 0
  %2097 = vmatmul.mubr.bf16.gmra.mrb[0].mxu0 %v1992
  %v2098 = vpop.f32.mrb[0].mxu0
  %v2099 = vadd.f32 %v2014, %v2098
  %v2100 = vpop.f32.mrb[0].mxu0
  %v2101 = vpop.f32.mrb[0].mxu0
  %v2102 = vpop.f32.mrb[0].mxu0
  %2103 = vdwg.mxu0
  %2104 = vst [vmem:[%s9] sm:$0xff] %v2099
  // Predicated region
  $region38: #{forward.1} parent=0 // pred_check
    _
  $region39: #{forward.1} parent=0 // pred_check_branch
    %2106 = sbr.rel (0) target = $region41
  $region40: #{forward.1} parent=0 // pred_region
    _
  $region41: #{forward.1} parent=0 // pred_fallthru
    _
  // Predicated region
  $region42: #{forward.1} parent=0 // pred_check
    _
  $region43: #{forward.1} parent=0 // pred_check_branch
    %2108 = sbr.rel (0) target = $region45
  $region44: #{forward.1} parent=0 // pred_region
    _
  $region45: #{forward.1} parent=0 // pred_fallthru
    _

</llo_original>
